<compile_context>
chip_gen: v6e
topology: v6e:2x2x1
jax: 0.10.0
libtpu: 0.0.40
codegen_flags: <defaults>
</compile_context>

<pallas_src>
import functools
from collections import namedtuple

import jax
import jax.numpy as jnp
from jax.experimental import pallas as pl
from jax.experimental.pallas import tpu as pltpu

LANE = 128                  # channel dims padded to a multiple of the lane width
_MM_DTYPE = jnp.bfloat16    # matmul operand dtype (f32 accumulation on the MXU)
_SPLIT_IM2COL_DOTS = False  # True: k accumulating K=C dots (v5e); False: one K=k*C dot (v6e/v7x)

_LayerMeta = namedtuple(
    "_LayerMeta", ["k", "d", "pad", "halo", "cin_p", "cout_p", "has_ds"])


def _round_up(n, m):
    return ((n + m - 1) // m) * m


# --------------------------------------------------------------------------- #
# Fused kernel
# --------------------------------------------------------------------------- #
def _tcn_fused_kernel(*refs, metas, tl):
    """All TemporalBlocks for one (batch, L-tile) grid cell.

    refs (in order):
      x_ref   (1, TL, cin0_p)                        current input tile
      per layer l: W1, b1, W2, b2, [Wd, bd]          resident folded weights
      o_ref   (1, TL, cout_last_p)
      per layer l: win1 (halo+TL, cin_p) f32         carried conv1-input window
                   win2 (halo+TL, cout_p) f32        carried conv2-input (h1) window
      cols    (TL, max_kC) bf16                      shared im2col staging buffer
    """
    n_layers = len(metas)
    it = iter(refs)
    x_ref = next(it)
    layer_wrefs = []
    for m in metas:
        n = 6 if m.has_ds else 4
        layer_wrefs.append(tuple(next(it) for _ in range(n)))
    o_ref = next(it)
    layer_wins = [(next(it), next(it)) for _ in range(n_layers)]
    cols_ref = next(it)

    i = pl.program_id(1)    # L-tile index within the (padded) sequence

    # Reset the causal-history rows at the first L-tile of every batch row.
    @pl.when(i == 0)
    def _():
        for m, (win1, win2) in zip(metas, layer_wins):
            if m.pad > 0:
                off = m.halo - m.pad
                win1[pl.ds(off, m.pad), :] = jnp.zeros((m.pad, m.cin_p), jnp.float32)
                win2[pl.ds(off, m.pad), :] = jnp.zeros((m.pad, m.cout_p), jnp.float32)

    def conv(win, c_p, w_ref, b_ref, m):
        """Causal dilated conv (+ folded BN) + ReLU over this tile's TL steps."""
        off = m.halo - m.pad
        if _SPLIT_IM2COL_DOTS:
            acc = None
            for j in range(m.k):
                a = win[pl.ds(off + j * m.d, tl), :].astype(_MM_DTYPE)
                p = jnp.dot(a, w_ref[pl.ds(j * c_p, c_p), :],
                            preferred_element_type=jnp.float32)
                acc = p if acc is None else acc + p
        else:
            # Stage shifted slices at lane-aligned channel offsets, one wide dot.
            for j in range(m.k):
                cols_ref[:, pl.ds(j * c_p, c_p)] = (
                    win[pl.ds(off + j * m.d, tl), :].astype(_MM_DTYPE))
            acc = jnp.dot(cols_ref[:, pl.ds(0, m.k * c_p)], w_ref[...],
                          preferred_element_type=jnp.float32)
        return jnp.maximum(acc + b_ref[...], 0.0)

    h = x_ref[0]                                     # (TL, cin0_p) f32 layer input
    for m, wr, (win1, win2) in zip(metas, layer_wrefs, layer_wins):
        if m.has_ds:
            w1_ref, b1_ref, w2_ref, b2_ref, wd_ref, bd_ref = wr
        else:
            w1_ref, b1_ref, w2_ref, b2_ref = wr

        # conv1 (+BN1) + ReLU
        win1[pl.ds(m.halo, tl), :] = h               # sublane-aligned tile store
        h1 = conv(win1, m.cin_p, w1_ref, b1_ref, m)

        # conv2 (+BN2) + ReLU  (history of h1 carried in win2; zeros at t < 0)
        win2[pl.ds(m.halo, tl), :] = h1
        h2 = conv(win2, m.cout_p, w2_ref, b2_ref, m)

        # residual: identity when channels match, 1x1-conv matmul otherwise.
        x_tile = win1[pl.ds(m.halo, tl), :]
        if m.has_ds:
            res = jnp.dot(x_tile.astype(_MM_DTYPE), wd_ref[...],
                          preferred_element_type=jnp.float32) + bd_ref[...]
        else:
            res = x_tile
        h = jnp.maximum(h2 + res, 0.0)

        # Roll the causal history forward for the next L-tile of this batch row.
        if m.pad > 0:
            off = m.halo - m.pad
            win1[pl.ds(off, m.pad), :] = win1[pl.ds(off + tl, m.pad), :]
            win2[pl.ds(off, m.pad), :] = win2[pl.ds(off + tl, m.pad), :]

    o_ref[0] = h.astype(o_ref.dtype)


# --------------------------------------------------------------------------- #
# Parameter folding / planning / wrapper
# --------------------------------------------------------------------------- #
def prepare_params(raw_params, *, kernel_size, eps=1e-5):
    """Fold eval-mode BatchNorm into the convs, zero-pad channels to the 128-lane
    width, reshape weights for the im2col matmul and cast them to bf16."""
    prepped = []
    for p in raw_params:
        k, cin, cout = p["w1"].shape
        assert k == kernel_size
        cin_p, cout_p = _round_up(cin, LANE), _round_up(cout, LANE)

        def fold(w, b, gamma, beta, mean, var):
            s = gamma / jnp.sqrt(var + eps)                   # (cout,)
            return w * s[None, None, :], b * s + (beta - mean * s)

        w1, b1 = fold(p["w1"], p["b1"], p["g1"], p["be1"], p["m1"], p["v1"])
        w2, b2 = fold(p["w2"], p["b2"], p["g2"], p["be2"], p["m2"], p["v2"])

        def pad_w(w, ci_p, co_p):           # (k, ci, co) -> (k*ci_p, co_p) bf16
            w = jnp.pad(w, ((0, 0), (0, ci_p - w.shape[1]), (0, co_p - w.shape[2])))
            return w.reshape(kernel_size * ci_p, co_p).astype(_MM_DTYPE)

        def pad_b(b, co_p):                 # (co,) -> (1, co_p) f32
            return jnp.pad(b, (0, co_p - b.shape[0])).reshape(1, co_p).astype(jnp.float32)

        bp = dict(W1=pad_w(w1, cin_p, cout_p), b1=pad_b(b1, cout_p),
                  W2=pad_w(w2, cout_p, cout_p), b2=pad_b(b2, cout_p),
                  Wd=None, bd=None, cin_p=cin_p, cout_p=cout_p)
        if p["wd"] is not None:
            wd = jnp.pad(p["wd"], ((0, cin_p - cin), (0, cout_p - cout)))
            bp["Wd"] = wd.astype(_MM_DTYPE)
            bp["bd"] = pad_b(p["bd"], cout_p)
        prepped.append(bp)
    return prepped


def _plan(params, kernel_size, L, l_tile_cap, vmem_budget):
    """Static layer metadata, L-tile size and VMEM footprint estimate."""
    metas = []
    for l, bp in enumerate(params):
        d = 2 ** l
        pad = (kernel_size - 1) * d
        halo = _round_up(max(pad, 1), 8)
        metas.append(_LayerMeta(kernel_size, d, pad, halo,
                                bp["cin_p"], bp["cout_p"], bp["Wd"] is not None))
    cin0_p, cout_last_p = metas[0].cin_p, metas[-1].cout_p
    max_kc = max(m.k * max(m.cin_p, m.cout_p) for m in metas)

    w_bytes = 0
    for m, bp in zip(metas, params):
        w_bytes += 2 * (bp["W1"].size * 2 + bp["W2"].size * 2
                        + bp["b1"].size * 4 + bp["b2"].size * 4)
        if m.has_ds:
            w_bytes += 2 * (bp["Wd"].size * 2 + bp["bd"].size * 4)

    def footprint(tl):
        f = w_bytes
        f += 2 * tl * cin0_p * 4 + 2 * tl * cout_last_p * 4       # pipelined in/out tiles
        f += tl * max_kc * 2                                      # shared im2col staging
        for m in metas:
            f += (m.halo + tl) * (m.cin_p + m.cout_p) * 4         # per-layer carry windows
        return f

    tl = max(8, min(l_tile_cap, _round_up(L, 8)))
    while tl > 8 and footprint(tl) > vmem_budget:
        tl = max(8, _round_up(tl // 2, 8))
    return metas, tl, max_kc, footprint(tl)


def _const_spec(shape):
    """Resident (grid-invariant) weight/bias block: fetched once."""
    zeros = (0,) * len(shape)
    return pl.BlockSpec(shape, lambda b, i, _z=zeros: _z)


def temporal_conv_net(x_ncl, raw_params, *, kernel_size, l_tile_cap=2048,
                      vmem_budget_bytes=20 * 1024 * 1024):
    """Full TCN forward.  x_ncl: (B, C, L) like PyTorch; returns (B, C_last, L)."""
    B, c_in, L = x_ncl.shape
    params = prepare_params(raw_params, kernel_size=kernel_size)
    metas, tl, max_kc, fp = _plan(params, kernel_size, L, l_tile_cap, vmem_budget_bytes)

    cin0_p, cout_last_p = metas[0].cin_p, metas[-1].cout_p

    x = jnp.transpose(x_ncl, (0, 2, 1)).astype(jnp.float32)       # (B, L, C) channels-last
    Lp = _round_up(L, tl)                                          # pad L, mask at the end
    x = jnp.pad(x, ((0, 0), (0, Lp - L), (0, cin0_p - c_in)))      # lane-dense channels
    nl = Lp // tl

    in_specs = [pl.BlockSpec((1, tl, cin0_p), lambda b, i: (b, i, 0))]
    inputs = [x]
    for m, bp in zip(metas, params):
        in_specs += [_const_spec(bp["W1"].shape), _const_spec(bp["b1"].shape),
                     _const_spec(bp["W2"].shape), _const_spec(bp["b2"].shape)]
        inputs += [bp["W1"], bp["b1"], bp["W2"], bp["b2"]]
        if m.has_ds:
            in_specs += [_const_spec(bp["Wd"].shape), _const_spec(bp["bd"].shape)]
            inputs += [bp["Wd"], bp["bd"]]

    scratch = []
    for m in metas:
        scratch.append(pltpu.VMEM((m.halo + tl, m.cin_p), jnp.float32))    # conv1 window+carry
        scratch.append(pltpu.VMEM((m.halo + tl, m.cout_p), jnp.float32))   # conv2 window+carry
    scratch.append(pltpu.VMEM((tl, max_kc), _MM_DTYPE))                    # shared im2col cols

    kernel = functools.partial(_tcn_fused_kernel, metas=tuple(metas), tl=tl)
    vmem_limit = int(min(max(fp * 5 // 4 + (4 << 20), 32 << 20), 112 << 20))

    y = pl.pallas_call(
        kernel,
        out_shape=jax.ShapeDtypeStruct((B, Lp, cout_last_p), jnp.float32),
        grid_spec=pltpu.PrefetchScalarGridSpec(
            num_scalar_prefetch=0,
            grid=(B, nl),                     # batch parallel (keep B>=2 for v7x's 2 TCs)
            in_specs=in_specs,
            out_specs=pl.BlockSpec((1, tl, cout_last_p), lambda b, i: (b, i, 0)),
            scratch_shapes=scratch,
        ),
        compiler_params=pltpu.CompilerParams(
            dimension_semantics=("parallel", "arbitrary"),   # L axis carries state
            vmem_limit_bytes=vmem_limit,
        ),
    )(*inputs)

    c_out = raw_params[-1]["w1"].shape[2]
    return jnp.transpose(y[:, :L, :c_out], (0, 2, 1))             # back to (B, C, L)


# --------------------------------------------------------------------------- #
# Pure-JAX reference + synthetic params
# --------------------------------------------------------------------------- #
def temporal_conv_net_reference(x_ncl, raw_params, *, kernel_size, eps=1e-5):
    """Pure-JAX f32 reference of the PyTorch module in eval mode."""
    x = jnp.transpose(x_ncl, (0, 2, 1))                           # (B, L, C)
    L = x.shape[1]
    for i, p in enumerate(raw_params):
        dilation = 2 ** i
        pad = (kernel_size - 1) * dilation

        def causal_conv(h, w, b):                                 # w: (k, ci, co)
            hp = jnp.pad(h, ((0, 0), (pad, 0), (0, 0)))
            acc = sum(jnp.einsum("blc,cd->bld",
                                 hp[:, j * dilation: j * dilation + L, :], w[j])
                      for j in range(kernel_size))
            return acc + b

        def bn(h, gamma, beta, mean, var):
            return (h - mean) / jnp.sqrt(var + eps) * gamma + beta

        h = jax.nn.relu(bn(causal_conv(x, p["w1"], p["b1"]),
                           p["g1"], p["be1"], p["m1"], p["v1"]))
        h = jax.nn.relu(bn(causal_conv(h, p["w2"], p["b2"]),
                           p["g2"], p["be2"], p["m2"], p["v2"]))
        res = x if p["wd"] is None else jnp.einsum("blc,cd->bld", x, p["wd"]) + p["bd"]
        x = jax.nn.relu(h + res)
    return jnp.transpose(x, (0, 2, 1))


def init_params(key, num_inputs, num_channels, kernel_size):
    """Synthetic parameters matching the PyTorch module at init (eval mode).

    Conv weights are the effective weight-normed weights (== kaiming init),
    stored channels-last as (k, Cin, Cout); BatchNorm uses PyTorch defaults."""
    params = []
    cin = num_inputs
    for cout in num_channels:
        key, k0, k1, k2, k3, k4, k5 = jax.random.split(key, 7)
        fan1 = cin * kernel_size
        fan2 = cout * kernel_size
        w1 = jax.random.normal(k0, (kernel_size, cin, cout), jnp.float32) * (2.0 / fan1) ** 0.5
        b1 = jax.random.uniform(k1, (cout,), jnp.float32, -1.0, 1.0) / fan1 ** 0.5
        w2 = jax.random.normal(k2, (kernel_size, cout, cout), jnp.float32) * (2.0 / fan2) ** 0.5
        b2 = jax.random.uniform(k3, (cout,), jnp.float32, -1.0, 1.0) / fan2 ** 0.5
        bn = dict(
            g1=jnp.ones((cout,), jnp.float32), be1=jnp.zeros((cout,), jnp.float32),
            m1=jnp.zeros((cout,), jnp.float32), v1=jnp.ones((cout,), jnp.float32),
            g2=jnp.ones((cout,), jnp.float32), be2=jnp.zeros((cout,), jnp.float32),
            m2=jnp.zeros((cout,), jnp.float32), v2=jnp.ones((cout,), jnp.float32),
        )
        if cin != cout:
            wd = jax.random.normal(k4, (cin, cout), jnp.float32) * (2.0 / cin) ** 0.5
            bd = jax.random.uniform(k5, (cout,), jnp.float32, -1.0, 1.0) / cin ** 0.5
        else:
            wd, bd = None, None
        params.append(dict(w1=w1, b1=b1, w2=w2, b2=b2, wd=wd, bd=bd, **bn))
        cin = cout
    return params


if __name__ == "__main__":
    key = jax.random.PRNGKey(0)
    kx, kp = jax.random.split(key)

    B, C_IN, L = 2, 4, 40
    NUM_CHANNELS = (8, 8, 16)   # three TemporalBlocks, dilations 1, 2, 4
    KERNEL_SIZE = 2             # (8 -> 8) exercises the identity-residual path

    x = jax.random.normal(kx, (B, C_IN, L), jnp.float32)     # NCL like PyTorch
    params = init_params(kp, C_IN, NUM_CHANNELS, KERNEL_SIZE)

    # Small L-tile cap so the test exercises the cross-tile causal-carry path
    # (L=40 with tl=16 -> 3 tiles, last one zero-padded then masked off).
    fwd = jax.jit(functools.partial(temporal_conv_net, kernel_size=KERNEL_SIZE,
                                    l_tile_cap=16))
    y = jax.block_until_ready(fwd(x, params))

    assert y.shape == (B, NUM_CHANNELS[-1], L), y.shape
    assert bool(jnp.all(jnp.isfinite(y)))

    # bf16-operand / f32-accumulation matmuls vs. the pure-f32 reference.
    y_ref = temporal_conv_net_reference(x, params, kernel_size=KERNEL_SIZE)
    err = float(jnp.max(jnp.abs(y - y_ref)))
    assert bool(jnp.allclose(y, y_ref, rtol=5e-2, atol=5e-2)), err

    print("KERNEL_OK")
</pallas_src>

<mosaic_0001>
module attributes {stable_mosaic.version = 11 : i64} {
  func.func @_tcn_fused_kernel(%arg0: i32, %arg1: i32, %arg2: memref<1x16x128xf32, #tpu.memory_space<vmem>>, %arg3: memref<256x128xbf16, #tpu.memory_space<vmem>>, %arg4: memref<1x128xf32, #tpu.memory_space<vmem>>, %arg5: memref<256x128xbf16, #tpu.memory_space<vmem>>, %arg6: memref<1x128xf32, #tpu.memory_space<vmem>>, %arg7: memref<128x128xbf16, #tpu.memory_space<vmem>>, %arg8: memref<1x128xf32, #tpu.memory_space<vmem>>, %arg9: memref<256x128xbf16, #tpu.memory_space<vmem>>, %arg10: memref<1x128xf32, #tpu.memory_space<vmem>>, %arg11: memref<256x128xbf16, #tpu.memory_space<vmem>>, %arg12: memref<1x128xf32, #tpu.memory_space<vmem>>, %arg13: memref<256x128xbf16, #tpu.memory_space<vmem>>, %arg14: memref<1x128xf32, #tpu.memory_space<vmem>>, %arg15: memref<256x128xbf16, #tpu.memory_space<vmem>>, %arg16: memref<1x128xf32, #tpu.memory_space<vmem>>, %arg17: memref<128x128xbf16, #tpu.memory_space<vmem>>, %arg18: memref<1x128xf32, #tpu.memory_space<vmem>>, %arg19: memref<1x16x128xf32, #tpu.memory_space<vmem>>, %arg20: memref<24x128xf32, #tpu.memory_space<vmem>>, %arg21: memref<24x128xf32, #tpu.memory_space<vmem>>, %arg22: memref<24x128xf32, #tpu.memory_space<vmem>>, %arg23: memref<24x128xf32, #tpu.memory_space<vmem>>, %arg24: memref<24x128xf32, #tpu.memory_space<vmem>>, %arg25: memref<24x128xf32, #tpu.memory_space<vmem>>, %arg26: memref<16x256xbf16, #tpu.memory_space<vmem>>) attributes {dimension_semantics = [#tpu.dimension_semantics<parallel>, #tpu.dimension_semantics<arbitrary>], iteration_bounds = array<i64: 2, 3>, scalar_prefetch = 0 : i64, scratch_operands = 7 : i64, tpu.core_type = #tpu.core_type<tc>, window_params = [{transform_indices = @transform_0, window_bounds = array<i64: 1, 16, 128>}, {pipeline_mode = #tpu.pipeline_mode<synchronous>, transform_indices = @transform_1, window_bounds = array<i64: 256, 128>}, {pipeline_mode = #tpu.pipeline_mode<synchronous>, transform_indices = @transform_2, window_bounds = array<i64: 1, 128>}, {pipeline_mode = #tpu.pipeline_mode<synchronous>, transform_indices = @transform_3, window_bounds = array<i64: 256, 128>}, {pipeline_mode = #tpu.pipeline_mode<synchronous>, transform_indices = @transform_4, window_bounds = array<i64: 1, 128>}, {pipeline_mode = #tpu.pipeline_mode<synchronous>, transform_indices = @transform_5, window_bounds = array<i64: 128, 128>}, {pipeline_mode = #tpu.pipeline_mode<synchronous>, transform_indices = @transform_6, window_bounds = array<i64: 1, 128>}, {pipeline_mode = #tpu.pipeline_mode<synchronous>, transform_indices = @transform_7, window_bounds = array<i64: 256, 128>}, {pipeline_mode = #tpu.pipeline_mode<synchronous>, transform_indices = @transform_8, window_bounds = array<i64: 1, 128>}, {pipeline_mode = #tpu.pipeline_mode<synchronous>, transform_indices = @transform_9, window_bounds = array<i64: 256, 128>}, {pipeline_mode = #tpu.pipeline_mode<synchronous>, transform_indices = @transform_10, window_bounds = array<i64: 1, 128>}, {pipeline_mode = #tpu.pipeline_mode<synchronous>, transform_indices = @transform_11, window_bounds = array<i64: 256, 128>}, {pipeline_mode = #tpu.pipeline_mode<synchronous>, transform_indices = @transform_12, window_bounds = array<i64: 1, 128>}, {pipeline_mode = #tpu.pipeline_mode<synchronous>, transform_indices = @transform_13, window_bounds = array<i64: 256, 128>}, {pipeline_mode = #tpu.pipeline_mode<synchronous>, transform_indices = @transform_14, window_bounds = array<i64: 1, 128>}, {pipeline_mode = #tpu.pipeline_mode<synchronous>, transform_indices = @transform_15, window_bounds = array<i64: 128, 128>}, {pipeline_mode = #tpu.pipeline_mode<synchronous>, transform_indices = @transform_16, window_bounds = array<i64: 1, 128>}, {transform_indices = @transform_17, window_bounds = array<i64: 1, 16, 128>}]} {
    %c0_i32 = arith.constant 0 : i32
    %0 = arith.cmpi eq, %arg1, %c0_i32 : i32
    %1 = arith.extui %0 : i1 to i32
    %c0_i32_0 = arith.constant 0 : i32
    %2 = arith.cmpi ne, %1, %c0_i32_0 : i32
    scf.if %2 {
      %cst_148 = arith.constant 0.000000e+00 : f32
      %134 = vector.broadcast %cst_148 : f32 to vector<1x128xf32>
      %c7_149 = arith.constant 7 : index
      %c0_150 = arith.constant 0 : index
      %135 = vector.load %arg20[%c7_149, %c0_150] : memref<24x128xf32, #tpu.memory_space<vmem>>, vector<1x128xf32>
      tpu.vector_store %arg20[%c7_149, %c0_150], %134 {strides = array<i32>} : memref<24x128xf32, #tpu.memory_space<vmem>>, vector<1x128xf32>,
      %cst_151 = arith.constant 0.000000e+00 : f32
      %136 = vector.broadcast %cst_151 : f32 to vector<1x128xf32>
      %c7_152 = arith.constant 7 : index
      %c0_153 = arith.constant 0 : index
      %137 = vector.load %arg21[%c7_152, %c0_153] : memref<24x128xf32, #tpu.memory_space<vmem>>, vector<1x128xf32>
      tpu.vector_store %arg21[%c7_152, %c0_153], %136 {strides = array<i32>} : memref<24x128xf32, #tpu.memory_space<vmem>>, vector<1x128xf32>,
      %cst_154 = arith.constant 0.000000e+00 : f32
      %138 = vector.broadcast %cst_154 : f32 to vector<2x128xf32>
      %c6_155 = arith.constant 6 : index
      %c0_156 = arith.constant 0 : index
      %139 = vector.load %arg22[%c6_155, %c0_156] : memref<24x128xf32, #tpu.memory_space<vmem>>, vector<2x128xf32>
      tpu.vector_store %arg22[%c6_155, %c0_156], %138 {strides = array<i32>} : memref<24x128xf32, #tpu.memory_space<vmem>>, vector<2x128xf32>,
      %cst_157 = arith.constant 0.000000e+00 : f32
      %140 = vector.broadcast %cst_157 : f32 to vector<2x128xf32>
      %c6_158 = arith.constant 6 : index
      %c0_159 = arith.constant 0 : index
      %141 = vector.load %arg23[%c6_158, %c0_159] : memref<24x128xf32, #tpu.memory_space<vmem>>, vector<2x128xf32>
      tpu.vector_store %arg23[%c6_158, %c0_159], %140 {strides = array<i32>} : memref<24x128xf32, #tpu.memory_space<vmem>>, vector<2x128xf32>,
      %cst_160 = arith.constant 0.000000e+00 : f32
      %142 = vector.broadcast %cst_160 : f32 to vector<4x128xf32>
      %c4_161 = arith.constant 4 : index
      %c0_162 = arith.constant 0 : index
      %143 = vector.load %arg24[%c4_161, %c0_162] : memref<24x128xf32, #tpu.memory_space<vmem>>, vector<4x128xf32>
      tpu.vector_store %arg24[%c4_161, %c0_162], %142 {strides = array<i32>} : memref<24x128xf32, #tpu.memory_space<vmem>>, vector<4x128xf32>,
      %cst_163 = arith.constant 0.000000e+00 : f32
      %144 = vector.broadcast %cst_163 : f32 to vector<4x128xf32>
      %c4_164 = arith.constant 4 : index
      %c0_165 = arith.constant 0 : index
      %145 = vector.load %arg25[%c4_164, %c0_165] : memref<24x128xf32, #tpu.memory_space<vmem>>, vector<4x128xf32>
      tpu.vector_store %arg25[%c4_164, %c0_165], %144 {strides = array<i32>} : memref<24x128xf32, #tpu.memory_space<vmem>>, vector<4x128xf32>,
    } else {
    }
    %c0 = arith.constant 0 : index
    %c0_1 = arith.constant 0 : index
    %c0_2 = arith.constant 0 : index
    %3 = vector.load %arg2[%c0, %c0_1, %c0_2] : memref<1x16x128xf32, #tpu.memory_space<vmem>>, vector<1x16x128xf32>
    %4 = vector.shape_cast %3 : vector<1x16x128xf32> to vector<16x128xf32>
    %c8 = arith.constant 8 : index
    %c0_3 = arith.constant 0 : index
    %5 = vector.load %arg20[%c8, %c0_3] : memref<24x128xf32, #tpu.memory_space<vmem>>, vector<16x128xf32>
    tpu.vector_store %arg20[%c8, %c0_3], %4 {strides = array<i32>} : memref<24x128xf32, #tpu.memory_space<vmem>>, vector<16x128xf32>,
    %c7 = arith.constant 7 : index
    %c0_4 = arith.constant 0 : index
    %6 = vector.load %arg20[%c7, %c0_4] : memref<24x128xf32, #tpu.memory_space<vmem>>, vector<16x128xf32>
    %7 = arith.truncf %6 : vector<16x128xf32> to vector<16x128xbf16>
    %c0_5 = arith.constant 0 : index
    %c0_6 = arith.constant 0 : index
    %8 = vector.load %arg26[%c0_5, %c0_6] : memref<16x256xbf16, #tpu.memory_space<vmem>>, vector<16x128xbf16>
    tpu.vector_store %arg26[%c0_5, %c0_6], %7 {strides = array<i32>} : memref<16x256xbf16, #tpu.memory_space<vmem>>, vector<16x128xbf16>,
    %c8_7 = arith.constant 8 : index
    %c0_8 = arith.constant 0 : index
    %9 = vector.load %arg20[%c8_7, %c0_8] : memref<24x128xf32, #tpu.memory_space<vmem>>, vector<16x128xf32>
    %10 = arith.truncf %9 : vector<16x128xf32> to vector<16x128xbf16>
    %c0_9 = arith.constant 0 : index
    %c128 = arith.constant 128 : index
    %11 = vector.load %arg26[%c0_9, %c128] : memref<16x256xbf16, #tpu.memory_space<vmem>>, vector<16x128xbf16>
    tpu.vector_store %arg26[%c0_9, %c128], %10 {strides = array<i32>} : memref<16x256xbf16, #tpu.memory_space<vmem>>, vector<16x128xbf16>,
    %c0_10 = arith.constant 0 : index
    %c0_11 = arith.constant 0 : index
    %12 = vector.load %arg26[%c0_10, %c0_11] : memref<16x256xbf16, #tpu.memory_space<vmem>>, vector<16x256xbf16>
    %c0_12 = arith.constant 0 : index
    %c0_13 = arith.constant 0 : index
    %13 = vector.load %arg3[%c0_12, %c0_13] : memref<256x128xbf16, #tpu.memory_space<vmem>>, vector<256x128xbf16>
    %cst = arith.constant dense<0.000000e+00> : vector<16x128xf32>
    %14 = tpu.matmul %12, %13, %cst {dimension_numbers = #tpu.dot_dimension_numbers<[1], [0], [0], [1], [0, 0, 1, 1], [], []>} : vector<16x256xbf16>, vector<256x128xbf16>, vector<16x128xf32> -> vector<16x128xf32>
    %c0_14 = arith.constant 0 : index
    %c0_15 = arith.constant 0 : index
    %15 = vector.load %arg4[%c0_14, %c0_15] : memref<1x128xf32, #tpu.memory_space<vmem>>, vector<1x128xf32>
    %16 = vector.broadcast %15 : vector<1x128xf32> to vector<16x128xf32>
    %17 = arith.addf %14, %16 : vector<16x128xf32>
    %cst_16 = arith.constant 0.000000e+00 : f32
    %18 = vector.broadcast %cst_16 : f32 to vector<16x128xf32>
    %19 = arith.maximumf %17, %18 : vector<16x128xf32>
    %c8_17 = arith.constant 8 : index
    %c0_18 = arith.constant 0 : index
    %20 = vector.load %arg21[%c8_17, %c0_18] : memref<24x128xf32, #tpu.memory_space<vmem>>, vector<16x128xf32>
    tpu.vector_store %arg21[%c8_17, %c0_18], %19 {strides = array<i32>} : memref<24x128xf32, #tpu.memory_space<vmem>>, vector<16x128xf32>,
    %c7_19 = arith.constant 7 : index
    %c0_20 = arith.constant 0 : index
    %21 = vector.load %arg21[%c7_19, %c0_20] : memref<24x128xf32, #tpu.memory_space<vmem>>, vector<16x128xf32>
    %22 = arith.truncf %21 : vector<16x128xf32> to vector<16x128xbf16>
    %c0_21 = arith.constant 0 : index
    %c0_22 = arith.constant 0 : index
    %23 = vector.load %arg26[%c0_21, %c0_22] : memref<16x256xbf16, #tpu.memory_space<vmem>>, vector<16x128xbf16>
    tpu.vector_store %arg26[%c0_21, %c0_22], %22 {strides = array<i32>} : memref<16x256xbf16, #tpu.memory_space<vmem>>, vector<16x128xbf16>,
    %c8_23 = arith.constant 8 : index
    %c0_24 = arith.constant 0 : index
    %24 = vector.load %arg21[%c8_23, %c0_24] : memref<24x128xf32, #tpu.memory_space<vmem>>, vector<16x128xf32>
    %25 = arith.truncf %24 : vector<16x128xf32> to vector<16x128xbf16>
    %c0_25 = arith.constant 0 : index
    %c128_26 = arith.constant 128 : index
    %26 = vector.load %arg26[%c0_25, %c128_26] : memref<16x256xbf16, #tpu.memory_space<vmem>>, vector<16x128xbf16>
    tpu.vector_store %arg26[%c0_25, %c128_26], %25 {strides = array<i32>} : memref<16x256xbf16, #tpu.memory_space<vmem>>, vector<16x128xbf16>,
    %c0_27 = arith.constant 0 : index
    %c0_28 = arith.constant 0 : index
    %27 = vector.load %arg26[%c0_27, %c0_28] : memref<16x256xbf16, #tpu.memory_space<vmem>>, vector<16x256xbf16>
    %c0_29 = arith.constant 0 : index
    %c0_30 = arith.constant 0 : index
    %28 = vector.load %arg5[%c0_29, %c0_30] : memref<256x128xbf16, #tpu.memory_space<vmem>>, vector<256x128xbf16>
    %cst_31 = arith.constant dense<0.000000e+00> : vector<16x128xf32>
    %29 = tpu.matmul %27, %28, %cst_31 {dimension_numbers = #tpu.dot_dimension_numbers<[1], [0], [0], [1], [0, 0, 1, 1], [], []>} : vector<16x256xbf16>, vector<256x128xbf16>, vector<16x128xf32> -> vector<16x128xf32>
    %c0_32 = arith.constant 0 : index
    %c0_33 = arith.constant 0 : index
    %30 = vector.load %arg6[%c0_32, %c0_33] : memref<1x128xf32, #tpu.memory_space<vmem>>, vector<1x128xf32>
    %31 = vector.broadcast %30 : vector<1x128xf32> to vector<16x128xf32>
    %32 = arith.addf %29, %31 : vector<16x128xf32>
    %cst_34 = arith.constant 0.000000e+00 : f32
    %33 = vector.broadcast %cst_34 : f32 to vector<16x128xf32>
    %34 = arith.maximumf %32, %33 : vector<16x128xf32>
    %c8_35 = arith.constant 8 : index
    %c0_36 = arith.constant 0 : index
    %35 = vector.load %arg20[%c8_35, %c0_36] : memref<24x128xf32, #tpu.memory_space<vmem>>, vector<16x128xf32>
    %36 = arith.truncf %35 : vector<16x128xf32> to vector<16x128xbf16>
    %c0_37 = arith.constant 0 : index
    %c0_38 = arith.constant 0 : index
    %37 = vector.load %arg7[%c0_37, %c0_38] : memref<128x128xbf16, #tpu.memory_space<vmem>>, vector<128x128xbf16>
    %cst_39 = arith.constant dense<0.000000e+00> : vector<16x128xf32>
    %38 = tpu.matmul %36, %37, %cst_39 {dimension_numbers = #tpu.dot_dimension_numbers<[1], [0], [0], [1], [0, 0, 1, 1], [], []>} : vector<16x128xbf16>, vector<128x128xbf16>, vector<16x128xf32> -> vector<16x128xf32>
    %c0_40 = arith.constant 0 : index
    %c0_41 = arith.constant 0 : index
    %39 = vector.load %arg8[%c0_40, %c0_41] : memref<1x128xf32, #tpu.memory_space<vmem>>, vector<1x128xf32>
    %40 = vector.broadcast %39 : vector<1x128xf32> to vector<16x128xf32>
    %41 = arith.addf %38, %40 : vector<16x128xf32>
    %42 = arith.addf %34, %41 : vector<16x128xf32>
    %cst_42 = arith.constant 0.000000e+00 : f32
    %43 = vector.broadcast %cst_42 : f32 to vector<16x128xf32>
    %44 = arith.maximumf %42, %43 : vector<16x128xf32>
    %c23 = arith.constant 23 : index
    %c0_43 = arith.constant 0 : index
    %45 = vector.load %arg20[%c23, %c0_43] : memref<24x128xf32, #tpu.memory_space<vmem>>, vector<1x128xf32>
    %c7_44 = arith.constant 7 : index
    %c0_45 = arith.constant 0 : index
    %46 = vector.load %arg20[%c7_44, %c0_45] : memref<24x128xf32, #tpu.memory_space<vmem>>, vector<1x128xf32>
    tpu.vector_store %arg20[%c7_44, %c0_45], %45 {strides = array<i32>} : memref<24x128xf32, #tpu.memory_space<vmem>>, vector<1x128xf32>,
    %c23_46 = arith.constant 23 : index
    %c0_47 = arith.constant 0 : index
    %47 = vector.load %arg21[%c23_46, %c0_47] : memref<24x128xf32, #tpu.memory_space<vmem>>, vector<1x128xf32>
    %c7_48 = arith.constant 7 : index
    %c0_49 = arith.constant 0 : index
    %48 = vector.load %arg21[%c7_48, %c0_49] : memref<24x128xf32, #tpu.memory_space<vmem>>, vector<1x128xf32>
    tpu.vector_store %arg21[%c7_48, %c0_49], %47 {strides = array<i32>} : memref<24x128xf32, #tpu.memory_space<vmem>>, vector<1x128xf32>,
    %c8_50 = arith.constant 8 : index
    %c0_51 = arith.constant 0 : index
    %49 = vector.load %arg22[%c8_50, %c0_51] : memref<24x128xf32, #tpu.memory_space<vmem>>, vector<16x128xf32>
    tpu.vector_store %arg22[%c8_50, %c0_51], %44 {strides = array<i32>} : memref<24x128xf32, #tpu.memory_space<vmem>>, vector<16x128xf32>,
    %c6 = arith.constant 6 : index
    %c0_52 = arith.constant 0 : index
    %50 = vector.load %arg22[%c6, %c0_52] : memref<24x128xf32, #tpu.memory_space<vmem>>, vector<16x128xf32>
    %51 = arith.truncf %50 : vector<16x128xf32> to vector<16x128xbf16>
    %c0_53 = arith.constant 0 : index
    %c0_54 = arith.constant 0 : index
    %52 = vector.load %arg26[%c0_53, %c0_54] : memref<16x256xbf16, #tpu.memory_space<vmem>>, vector<16x128xbf16>
    tpu.vector_store %arg26[%c0_53, %c0_54], %51 {strides = array<i32>} : memref<16x256xbf16, #tpu.memory_space<vmem>>, vector<16x128xbf16>,
    %c8_55 = arith.constant 8 : index
    %c0_56 = arith.constant 0 : index
    %53 = vector.load %arg22[%c8_55, %c0_56] : memref<24x128xf32, #tpu.memory_space<vmem>>, vector<16x128xf32>
    %54 = arith.truncf %53 : vector<16x128xf32> to vector<16x128xbf16>
    %c0_57 = arith.constant 0 : index
    %c128_58 = arith.constant 128 : index
    %55 = vector.load %arg26[%c0_57, %c128_58] : memref<16x256xbf16, #tpu.memory_space<vmem>>, vector<16x128xbf16>
    tpu.vector_store %arg26[%c0_57, %c128_58], %54 {strides = array<i32>} : memref<16x256xbf16, #tpu.memory_space<vmem>>, vector<16x128xbf16>,
    %c0_59 = arith.constant 0 : index
    %c0_60 = arith.constant 0 : index
    %56 = vector.load %arg26[%c0_59, %c0_60] : memref<16x256xbf16, #tpu.memory_space<vmem>>, vector<16x256xbf16>
    %c0_61 = arith.constant 0 : index
    %c0_62 = arith.constant 0 : index
    %57 = vector.load %arg9[%c0_61, %c0_62] : memref<256x128xbf16, #tpu.memory_space<vmem>>, vector<256x128xbf16>
    %cst_63 = arith.constant dense<0.000000e+00> : vector<16x128xf32>
    %58 = tpu.matmul %56, %57, %cst_63 {dimension_numbers = #tpu.dot_dimension_numbers<[1], [0], [0], [1], [0, 0, 1, 1], [], []>} : vector<16x256xbf16>, vector<256x128xbf16>, vector<16x128xf32> -> vector<16x128xf32>
    %c0_64 = arith.constant 0 : index
    %c0_65 = arith.constant 0 : index
    %59 = vector.load %arg10[%c0_64, %c0_65] : memref<1x128xf32, #tpu.memory_space<vmem>>, vector<1x128xf32>
    %60 = vector.broadcast %59 : vector<1x128xf32> to vector<16x128xf32>
    %61 = arith.addf %58, %60 : vector<16x128xf32>
    %cst_66 = arith.constant 0.000000e+00 : f32
    %62 = vector.broadcast %cst_66 : f32 to vector<16x128xf32>
    %63 = arith.maximumf %61, %62 : vector<16x128xf32>
    %c8_67 = arith.constant 8 : index
    %c0_68 = arith.constant 0 : index
    %64 = vector.load %arg23[%c8_67, %c0_68] : memref<24x128xf32, #tpu.memory_space<vmem>>, vector<16x128xf32>
    tpu.vector_store %arg23[%c8_67, %c0_68], %63 {strides = array<i32>} : memref<24x128xf32, #tpu.memory_space<vmem>>, vector<16x128xf32>,
    %c6_69 = arith.constant 6 : index
    %c0_70 = arith.constant 0 : index
    %65 = vector.load %arg23[%c6_69, %c0_70] : memref<24x128xf32, #tpu.memory_space<vmem>>, vector<16x128xf32>
    %66 = arith.truncf %65 : vector<16x128xf32> to vector<16x128xbf16>
    %c0_71 = arith.constant 0 : index
    %c0_72 = arith.constant 0 : index
    %67 = vector.load %arg26[%c0_71, %c0_72] : memref<16x256xbf16, #tpu.memory_space<vmem>>, vector<16x128xbf16>
    tpu.vector_store %arg26[%c0_71, %c0_72], %66 {strides = array<i32>} : memref<16x256xbf16, #tpu.memory_space<vmem>>, vector<16x128xbf16>,
    %c8_73 = arith.constant 8 : index
    %c0_74 = arith.constant 0 : index
    %68 = vector.load %arg23[%c8_73, %c0_74] : memref<24x128xf32, #tpu.memory_space<vmem>>, vector<16x128xf32>
    %69 = arith.truncf %68 : vector<16x128xf32> to vector<16x128xbf16>
    %c0_75 = arith.constant 0 : index
    %c128_76 = arith.constant 128 : index
    %70 = vector.load %arg26[%c0_75, %c128_76] : memref<16x256xbf16, #tpu.memory_space<vmem>>, vector<16x128xbf16>
    tpu.vector_store %arg26[%c0_75, %c128_76], %69 {strides = array<i32>} : memref<16x256xbf16, #tpu.memory_space<vmem>>, vector<16x128xbf16>,
    %c0_77 = arith.constant 0 : index
    %c0_78 = arith.constant 0 : index
    %71 = vector.load %arg26[%c0_77, %c0_78] : memref<16x256xbf16, #tpu.memory_space<vmem>>, vector<16x256xbf16>
    %c0_79 = arith.constant 0 : index
    %c0_80 = arith.constant 0 : index
    %72 = vector.load %arg11[%c0_79, %c0_80] : memref<256x128xbf16, #tpu.memory_space<vmem>>, vector<256x128xbf16>
    %cst_81 = arith.constant dense<0.000000e+00> : vector<16x128xf32>
    %73 = tpu.matmul %71, %72, %cst_81 {dimension_numbers = #tpu.dot_dimension_numbers<[1], [0], [0], [1], [0, 0, 1, 1], [], []>} : vector<16x256xbf16>, vector<256x128xbf16>, vector<16x128xf32> -> vector<16x128xf32>
    %c0_82 = arith.constant 0 : index
    %c0_83 = arith.constant 0 : index
    %74 = vector.load %arg12[%c0_82, %c0_83] : memref<1x128xf32, #tpu.memory_space<vmem>>, vector<1x128xf32>
    %75 = vector.broadcast %74 : vector<1x128xf32> to vector<16x128xf32>
    %76 = arith.addf %73, %75 : vector<16x128xf32>
    %cst_84 = arith.constant 0.000000e+00 : f32
    %77 = vector.broadcast %cst_84 : f32 to vector<16x128xf32>
    %78 = arith.maximumf %76, %77 : vector<16x128xf32>
    %c8_85 = arith.constant 8 : index
    %c0_86 = arith.constant 0 : index
    %79 = vector.load %arg22[%c8_85, %c0_86] : memref<24x128xf32, #tpu.memory_space<vmem>>, vector<16x128xf32>
    %80 = arith.addf %78, %79 : vector<16x128xf32>
    %cst_87 = arith.constant 0.000000e+00 : f32
    %81 = vector.broadcast %cst_87 : f32 to vector<16x128xf32>
    %82 = arith.maximumf %80, %81 : vector<16x128xf32>
    %c22 = arith.constant 22 : index
    %c0_88 = arith.constant 0 : index
    %83 = vector.load %arg22[%c22, %c0_88] : memref<24x128xf32, #tpu.memory_space<vmem>>, vector<2x128xf32>
    %c6_89 = arith.constant 6 : index
    %c0_90 = arith.constant 0 : index
    %84 = vector.load %arg22[%c6_89, %c0_90] : memref<24x128xf32, #tpu.memory_space<vmem>>, vector<2x128xf32>
    tpu.vector_store %arg22[%c6_89, %c0_90], %83 {strides = array<i32>} : memref<24x128xf32, #tpu.memory_space<vmem>>, vector<2x128xf32>,
    %c22_91 = arith.constant 22 : index
    %c0_92 = arith.constant 0 : index
    %85 = vector.load %arg23[%c22_91, %c0_92] : memref<24x128xf32, #tpu.memory_space<vmem>>, vector<2x128xf32>
    %c6_93 = arith.constant 6 : index
    %c0_94 = arith.constant 0 : index
    %86 = vector.load %arg23[%c6_93, %c0_94] : memref<24x128xf32, #tpu.memory_space<vmem>>, vector<2x128xf32>
    tpu.vector_store %arg23[%c6_93, %c0_94], %85 {strides = array<i32>} : memref<24x128xf32, #tpu.memory_space<vmem>>, vector<2x128xf32>,
    %c8_95 = arith.constant 8 : index
    %c0_96 = arith.constant 0 : index
    %87 = vector.load %arg24[%c8_95, %c0_96] : memref<24x128xf32, #tpu.memory_space<vmem>>, vector<16x128xf32>
    tpu.vector_store %arg24[%c8_95, %c0_96], %82 {strides = array<i32>} : memref<24x128xf32, #tpu.memory_space<vmem>>, vector<16x128xf32>,
    %c4 = arith.constant 4 : index
    %c0_97 = arith.constant 0 : index
    %88 = vector.load %arg24[%c4, %c0_97] : memref<24x128xf32, #tpu.memory_space<vmem>>, vector<16x128xf32>
    %89 = arith.truncf %88 : vector<16x128xf32> to vector<16x128xbf16>
    %c0_98 = arith.constant 0 : index
    %c0_99 = arith.constant 0 : index
    %90 = vector.load %arg26[%c0_98, %c0_99] : memref<16x256xbf16, #tpu.memory_space<vmem>>, vector<16x128xbf16>
    tpu.vector_store %arg26[%c0_98, %c0_99], %89 {strides = array<i32>} : memref<16x256xbf16, #tpu.memory_space<vmem>>, vector<16x128xbf16>,
    %c8_100 = arith.constant 8 : index
    %c0_101 = arith.constant 0 : index
    %91 = vector.load %arg24[%c8_100, %c0_101] : memref<24x128xf32, #tpu.memory_space<vmem>>, vector<16x128xf32>
    %92 = arith.truncf %91 : vector<16x128xf32> to vector<16x128xbf16>
    %c0_102 = arith.constant 0 : index
    %c128_103 = arith.constant 128 : index
    %93 = vector.load %arg26[%c0_102, %c128_103] : memref<16x256xbf16, #tpu.memory_space<vmem>>, vector<16x128xbf16>
    tpu.vector_store %arg26[%c0_102, %c128_103], %92 {strides = array<i32>} : memref<16x256xbf16, #tpu.memory_space<vmem>>, vector<16x128xbf16>,
    %c0_104 = arith.constant 0 : index
    %c0_105 = arith.constant 0 : index
    %94 = vector.load %arg26[%c0_104, %c0_105] : memref<16x256xbf16, #tpu.memory_space<vmem>>, vector<16x256xbf16>
    %c0_106 = arith.constant 0 : index
    %c0_107 = arith.constant 0 : index
    %95 = vector.load %arg13[%c0_106, %c0_107] : memref<256x128xbf16, #tpu.memory_space<vmem>>, vector<256x128xbf16>
    %cst_108 = arith.constant dense<0.000000e+00> : vector<16x128xf32>
    %96 = tpu.matmul %94, %95, %cst_108 {dimension_numbers = #tpu.dot_dimension_numbers<[1], [0], [0], [1], [0, 0, 1, 1], [], []>} : vector<16x256xbf16>, vector<256x128xbf16>, vector<16x128xf32> -> vector<16x128xf32>
    %c0_109 = arith.constant 0 : index
    %c0_110 = arith.constant 0 : index
    %97 = vector.load %arg14[%c0_109, %c0_110] : memref<1x128xf32, #tpu.memory_space<vmem>>, vector<1x128xf32>
    %98 = vector.broadcast %97 : vector<1x128xf32> to vector<16x128xf32>
    %99 = arith.addf %96, %98 : vector<16x128xf32>
    %cst_111 = arith.constant 0.000000e+00 : f32
    %100 = vector.broadcast %cst_111 : f32 to vector<16x128xf32>
    %101 = arith.maximumf %99, %100 : vector<16x128xf32>
    %c8_112 = arith.constant 8 : index
    %c0_113 = arith.constant 0 : index
    %102 = vector.load %arg25[%c8_112, %c0_113] : memref<24x128xf32, #tpu.memory_space<vmem>>, vector<16x128xf32>
    tpu.vector_store %arg25[%c8_112, %c0_113], %101 {strides = array<i32>} : memref<24x128xf32, #tpu.memory_space<vmem>>, vector<16x128xf32>,
    %c4_114 = arith.constant 4 : index
    %c0_115 = arith.constant 0 : index
    %103 = vector.load %arg25[%c4_114, %c0_115] : memref<24x128xf32, #tpu.memory_space<vmem>>, vector<16x128xf32>
    %104 = arith.truncf %103 : vector<16x128xf32> to vector<16x128xbf16>
    %c0_116 = arith.constant 0 : index
    %c0_117 = arith.constant 0 : index
    %105 = vector.load %arg26[%c0_116, %c0_117] : memref<16x256xbf16, #tpu.memory_space<vmem>>, vector<16x128xbf16>
    tpu.vector_store %arg26[%c0_116, %c0_117], %104 {strides = array<i32>} : memref<16x256xbf16, #tpu.memory_space<vmem>>, vector<16x128xbf16>,
    %c8_118 = arith.constant 8 : index
    %c0_119 = arith.constant 0 : index
    %106 = vector.load %arg25[%c8_118, %c0_119] : memref<24x128xf32, #tpu.memory_space<vmem>>, vector<16x128xf32>
    %107 = arith.truncf %106 : vector<16x128xf32> to vector<16x128xbf16>
    %c0_120 = arith.constant 0 : index
    %c128_121 = arith.constant 128 : index
    %108 = vector.load %arg26[%c0_120, %c128_121] : memref<16x256xbf16, #tpu.memory_space<vmem>>, vector<16x128xbf16>
    tpu.vector_store %arg26[%c0_120, %c128_121], %107 {strides = array<i32>} : memref<16x256xbf16, #tpu.memory_space<vmem>>, vector<16x128xbf16>,
    %c0_122 = arith.constant 0 : index
    %c0_123 = arith.constant 0 : index
    %109 = vector.load %arg26[%c0_122, %c0_123] : memref<16x256xbf16, #tpu.memory_space<vmem>>, vector<16x256xbf16>
    %c0_124 = arith.constant 0 : index
    %c0_125 = arith.constant 0 : index
    %110 = vector.load %arg15[%c0_124, %c0_125] : memref<256x128xbf16, #tpu.memory_space<vmem>>, vector<256x128xbf16>
    %cst_126 = arith.constant dense<0.000000e+00> : vector<16x128xf32>
    %111 = tpu.matmul %109, %110, %cst_126 {dimension_numbers = #tpu.dot_dimension_numbers<[1], [0], [0], [1], [0, 0, 1, 1], [], []>} : vector<16x256xbf16>, vector<256x128xbf16>, vector<16x128xf32> -> vector<16x128xf32>
    %c0_127 = arith.constant 0 : index
    %c0_128 = arith.constant 0 : index
    %112 = vector.load %arg16[%c0_127, %c0_128] : memref<1x128xf32, #tpu.memory_space<vmem>>, vector<1x128xf32>
    %113 = vector.broadcast %112 : vector<1x128xf32> to vector<16x128xf32>
    %114 = arith.addf %111, %113 : vector<16x128xf32>
    %cst_129 = arith.constant 0.000000e+00 : f32
    %115 = vector.broadcast %cst_129 : f32 to vector<16x128xf32>
    %116 = arith.maximumf %114, %115 : vector<16x128xf32>
    %c8_130 = arith.constant 8 : index
    %c0_131 = arith.constant 0 : index
    %117 = vector.load %arg24[%c8_130, %c0_131] : memref<24x128xf32, #tpu.memory_space<vmem>>, vector<16x128xf32>
    %118 = arith.truncf %117 : vector<16x128xf32> to vector<16x128xbf16>
    %c0_132 = arith.constant 0 : index
    %c0_133 = arith.constant 0 : index
    %119 = vector.load %arg17[%c0_132, %c0_133] : memref<128x128xbf16, #tpu.memory_space<vmem>>, vector<128x128xbf16>
    %cst_134 = arith.constant dense<0.000000e+00> : vector<16x128xf32>
    %120 = tpu.matmul %118, %119, %cst_134 {dimension_numbers = #tpu.dot_dimension_numbers<[1], [0], [0], [1], [0, 0, 1, 1], [], []>} : vector<16x128xbf16>, vector<128x128xbf16>, vector<16x128xf32> -> vector<16x128xf32>
    %c0_135 = arith.constant 0 : index
    %c0_136 = arith.constant 0 : index
    %121 = vector.load %arg18[%c0_135, %c0_136] : memref<1x128xf32, #tpu.memory_space<vmem>>, vector<1x128xf32>
    %122 = vector.broadcast %121 : vector<1x128xf32> to vector<16x128xf32>
    %123 = arith.addf %120, %122 : vector<16x128xf32>
    %124 = arith.addf %116, %123 : vector<16x128xf32>
    %cst_137 = arith.constant 0.000000e+00 : f32
    %125 = vector.broadcast %cst_137 : f32 to vector<16x128xf32>
    %126 = arith.maximumf %124, %125 : vector<16x128xf32>
    %c20 = arith.constant 20 : index
    %c0_138 = arith.constant 0 : index
    %127 = vector.load %arg24[%c20, %c0_138] : memref<24x128xf32, #tpu.memory_space<vmem>>, vector<4x128xf32>
    %c4_139 = arith.constant 4 : index
    %c0_140 = arith.constant 0 : index
    %128 = vector.load %arg24[%c4_139, %c0_140] : memref<24x128xf32, #tpu.memory_space<vmem>>, vector<4x128xf32>
    tpu.vector_store %arg24[%c4_139, %c0_140], %127 {strides = array<i32>} : memref<24x128xf32, #tpu.memory_space<vmem>>, vector<4x128xf32>,
    %c20_141 = arith.constant 20 : index
    %c0_142 = arith.constant 0 : index
    %129 = vector.load %arg25[%c20_141, %c0_142] : memref<24x128xf32, #tpu.memory_space<vmem>>, vector<4x128xf32>
    %c4_143 = arith.constant 4 : index
    %c0_144 = arith.constant 0 : index
    %130 = vector.load %arg25[%c4_143, %c0_144] : memref<24x128xf32, #tpu.memory_space<vmem>>, vector<4x128xf32>
    tpu.vector_store %arg25[%c4_143, %c0_144], %129 {strides = array<i32>} : memref<24x128xf32, #tpu.memory_space<vmem>>, vector<4x128xf32>,
    %c0_145 = arith.constant 0 : index
    %c0_146 = arith.constant 0 : index
    %c0_147 = arith.constant 0 : index
    %131 = vector.load %arg19[%c0_145, %c0_146, %c0_147] : memref<1x16x128xf32, #tpu.memory_space<vmem>>, vector<1x16x128xf32>
    %132 = vector.shape_cast %131 : vector<1x16x128xf32> to vector<16x128xf32>
    %133 = vector.shape_cast %126 : vector<16x128xf32> to vector<1x16x128xf32>
    tpu.vector_store %arg19[%c0_145, %c0_146, %c0_147], %133 {strides = array<i32>} : memref<1x16x128xf32, #tpu.memory_space<vmem>>, vector<1x16x128xf32>,
    return
  }
  func.func @transform_0(%arg0: i32, %arg1: i32) -> (i32, i32, i32) {
    %c0_i32 = arith.constant 0 : i32
    %c0_i32_0 = arith.constant 0 : i32
    return %arg0, %arg1, %c0_i32 : i32, i32, i32
  }
  func.func @transform_1(%arg0: i32, %arg1: i32) -> (i32, i32) {
    %c0_i32 = arith.constant 0 : i32
    %c0_i32_0 = arith.constant 0 : i32
    %c0_i32_1 = arith.constant 0 : i32
    return %c0_i32, %c0_i32_0 : i32, i32
  }
  func.func @transform_2(%arg0: i32, %arg1: i32) -> (i32, i32) {
    %c0_i32 = arith.constant 0 : i32
    %c0_i32_0 = arith.constant 0 : i32
    %c0_i32_1 = arith.constant 0 : i32
    return %c0_i32, %c0_i32_0 : i32, i32
  }
  func.func @transform_3(%arg0: i32, %arg1: i32) -> (i32, i32) {
    %c0_i32 = arith.constant 0 : i32
    %c0_i32_0 = arith.constant 0 : i32
    %c0_i32_1 = arith.constant 0 : i32
    return %c0_i32, %c0_i32_0 : i32, i32
  }
  func.func @transform_4(%arg0: i32, %arg1: i32) -> (i32, i32) {
    %c0_i32 = arith.constant 0 : i32
    %c0_i32_0 = arith.constant 0 : i32
    %c0_i32_1 = arith.constant 0 : i32
    return %c0_i32, %c0_i32_0 : i32, i32
  }
  func.func @transform_5(%arg0: i32, %arg1: i32) -> (i32, i32) {
    %c0_i32 = arith.constant 0 : i32
    %c0_i32_0 = arith.constant 0 : i32
    %c0_i32_1 = arith.constant 0 : i32
    return %c0_i32, %c0_i32_0 : i32, i32
  }
  func.func @transform_6(%arg0: i32, %arg1: i32) -> (i32, i32) {
    %c0_i32 = arith.constant 0 : i32
    %c0_i32_0 = arith.constant 0 : i32
    %c0_i32_1 = arith.constant 0 : i32
    return %c0_i32, %c0_i32_0 : i32, i32
  }
  func.func @transform_7(%arg0: i32, %arg1: i32) -> (i32, i32) {
    %c0_i32 = arith.constant 0 : i32
    %c0_i32_0 = arith.constant 0 : i32
    %c0_i32_1 = arith.constant 0 : i32
    return %c0_i32, %c0_i32_0 : i32, i32
  }
  func.func @transform_8(%arg0: i32, %arg1: i32) -> (i32, i32) {
    %c0_i32 = arith.constant 0 : i32
    %c0_i32_0 = arith.constant 0 : i32
    %c0_i32_1 = arith.constant 0 : i32
    return %c0_i32, %c0_i32_0 : i32, i32
  }
  func.func @transform_9(%arg0: i32, %arg1: i32) -> (i32, i32) {
    %c0_i32 = arith.constant 0 : i32
    %c0_i32_0 = arith.constant 0 : i32
    %c0_i32_1 = arith.constant 0 : i32
    return %c0_i32, %c0_i32_0 : i32, i32
  }
  func.func @transform_10(%arg0: i32, %arg1: i32) -> (i32, i32) {
    %c0_i32 = arith.constant 0 : i32
    %c0_i32_0 = arith.constant 0 : i32
    %c0_i32_1 = arith.constant 0 : i32
    return %c0_i32, %c0_i32_0 : i32, i32
  }
  func.func @transform_11(%arg0: i32, %arg1: i32) -> (i32, i32) {
    %c0_i32 = arith.constant 0 : i32
    %c0_i32_0 = arith.constant 0 : i32
    %c0_i32_1 = arith.constant 0 : i32
    return %c0_i32, %c0_i32_0 : i32, i32
  }
  func.func @transform_12(%arg0: i32, %arg1: i32) -> (i32, i32) {
    %c0_i32 = arith.constant 0 : i32
    %c0_i32_0 = arith.constant 0 : i32
    %c0_i32_1 = arith.constant 0 : i32
    return %c0_i32, %c0_i32_0 : i32, i32
  }
  func.func @transform_13(%arg0: i32, %arg1: i32) -> (i32, i32) {
    %c0_i32 = arith.constant 0 : i32
    %c0_i32_0 = arith.constant 0 : i32
    %c0_i32_1 = arith.constant 0 : i32
    return %c0_i32, %c0_i32_0 : i32, i32
  }
  func.func @transform_14(%arg0: i32, %arg1: i32) -> (i32, i32) {
    %c0_i32 = arith.constant 0 : i32
    %c0_i32_0 = arith.constant 0 : i32
    %c0_i32_1 = arith.constant 0 : i32
    return %c0_i32, %c0_i32_0 : i32, i32
  }
  func.func @transform_15(%arg0: i32, %arg1: i32) -> (i32, i32) {
    %c0_i32 = arith.constant 0 : i32
    %c0_i32_0 = arith.constant 0 : i32
    %c0_i32_1 = arith.constant 0 : i32
    return %c0_i32, %c0_i32_0 : i32, i32
  }
  func.func @transform_16(%arg0: i32, %arg1: i32) -> (i32, i32) {
    %c0_i32 = arith.constant 0 : i32
    %c0_i32_0 = arith.constant 0 : i32
    %c0_i32_1 = arith.constant 0 : i32
    return %c0_i32, %c0_i32_0 : i32, i32
  }
  func.func @transform_17(%arg0: i32, %arg1: i32) -> (i32, i32, i32) {
    %c0_i32 = arith.constant 0 : i32
    %c0_i32_0 = arith.constant 0 : i32
    return %arg0, %arg1, %c0_i32 : i32, i32, i32
  }
}

</mosaic_0001>

<llo_original>
// kernel: temporal_conv_net.1
$region0: #{temporal_conv_net.1}
  #allocation0 [shape = 'u32[]', space=smem, size = 0x4, offset = 0x4, fixed_abs, tag = 'smem constant byte address 0x4 - core index']
  #allocation1 [shape = 'u32[144,128]{1,0:T(1,128)}', space=vmem, size = 0x12000, scoped, tag = 'internal scratch']
  #allocation2 [shape = 'f32[24,128]{1,0:T(8,128)}', space=vmem, size = 0x3000, scoped, tag = 'scratch operand']
  #allocation3 [shape = 'f32[24,128]{1,0:T(8,128)}', space=vmem, size = 0x3000, scoped, tag = 'scratch operand']
  #allocation4 [shape = 'f32[24,128]{1,0:T(8,128)}', space=vmem, size = 0x3000, scoped, tag = 'scratch operand']
  #allocation5 [shape = 'f32[24,128]{1,0:T(8,128)}', space=vmem, size = 0x3000, scoped, tag = 'scratch operand']
  #allocation6 [shape = 'f32[24,128]{1,0:T(8,128)}', space=vmem, size = 0x3000, scoped, tag = 'scratch operand']
  #allocation7 [shape = 'f32[24,128]{1,0:T(8,128)}', space=vmem, size = 0x3000, scoped, tag = 'scratch operand']
  #allocation8 [shape = 'bf16[16,256]{1,0:T(8,128)(2,1)}', space=vmem, size = 0x2000, scoped, tag = 'scratch operand']
  %s0 = inlined_call_operand.vmem [shape: f32[2,48,128], index: 0, kind: input, shape index: {}]
  %s1 = inlined_call_operand.vmem [shape: bf16[256,128], index: 1, kind: input, shape index: {}]
  %s2 = inlined_call_operand.vmem [shape: f32[1,128], index: 2, kind: input, shape index: {}]
  %s3 = inlined_call_operand.vmem [shape: bf16[256,128], index: 3, kind: input, shape index: {}]
  %s4 = inlined_call_operand.vmem [shape: f32[1,128], index: 4, kind: input, shape index: {}]
  %s5 = inlined_call_operand.vmem [shape: bf16[128,128], index: 5, kind: input, shape index: {}]
  %s6 = inlined_call_operand.vmem [shape: f32[1,128], index: 6, kind: input, shape index: {}]
  %s7 = inlined_call_operand.vmem [shape: bf16[256,128], index: 7, kind: input, shape index: {}]
  %s8 = inlined_call_operand.vmem [shape: f32[1,128], index: 8, kind: input, shape index: {}]
  %s9 = inlined_call_operand.vmem [shape: bf16[256,128], index: 9, kind: input, shape index: {}]
  %s10 = inlined_call_operand.vmem [shape: f32[1,128], index: 10, kind: input, shape index: {}]
  %s11 = inlined_call_operand.vmem [shape: bf16[256,128], index: 11, kind: input, shape index: {}]
  %s12 = inlined_call_operand.vmem [shape: f32[1,128], index: 12, kind: input, shape index: {}]
  %s13 = inlined_call_operand.vmem [shape: bf16[256,128], index: 13, kind: input, shape index: {}]
  %s14 = inlined_call_operand.vmem [shape: f32[1,128], index: 14, kind: input, shape index: {}]
  %s15 = inlined_call_operand.vmem [shape: bf16[128,128], index: 15, kind: input, shape index: {}]
  %s16 = inlined_call_operand.vmem [shape: f32[1,128], index: 16, kind: input, shape index: {}]
  %s17 = inlined_call_operand.vmem [shape: f32[2,48,128], index: 17, kind: output, shape index: {}]
  %s18 = sld [smem:[#allocation0]]
  $region105: #{temporal_conv_net.1} parent=0
    _
  %s20 = ssub.s32 1, %s18
  %s21 = scalar_select 0, %s20, %s18
  loop: start=0, step=1, limit=8
  $region2: #{temporal_conv_net.1} parent=0 // loop_pre_header
    _
  $region3: #{temporal_conv_net.1} parent=0 // loop_header
    %s23 = sphi 0, %s27
    %p24 = scmp.ge.s32.totalorder %s23, 8
    %s30 = sphi 0, %s42
    %s31 = sphi 0, %s38
    %s32 = sphi 0, %s30
    %s33 = sphi 0, %s31
    %s34 = sphi 0, %s32
    %s35 = sphi 0, %s33
    %s47 = sphi 0, %s49
    %s50 = sphi 0, %s47
    %s51 = sphi 0, %s50
    %s67 = sphi 0, %s51
    %s71 = sphi 0, %s71
    %s73 = sphi 0, %s71
    %s74 = sphi 0, %s73
    %s88 = sphi 0, %s74
    %s92 = sphi 0, %s92
    %s94 = sphi 0, %s92
    %s95 = sphi 0, %s94
    %s109 = sphi 0, %s95
    %s113 = sphi 0, %s113
    %s115 = sphi 0, %s113
    %s116 = sphi 0, %s115
    %s130 = sphi 0, %s116
    %s134 = sphi 0, %s134
    %s136 = sphi 0, %s134
    %s137 = sphi 0, %s136
    %s151 = sphi 0, %s137
    %s155 = sphi 0, %s155
    %s157 = sphi 0, %s155
    %s158 = sphi 0, %s157
    %s172 = sphi 0, %s158
    %s176 = sphi 0, %s176
    %s178 = sphi 0, %s176
    %s179 = sphi 0, %s178
    %s193 = sphi 0, %s179
    %s197 = sphi 0, %s197
    %s199 = sphi 0, %s197
    %s200 = sphi 0, %s199
    %s214 = sphi 0, %s200
    %s218 = sphi 0, %s218
    %s220 = sphi 0, %s218
    %s221 = sphi 0, %s220
    %s235 = sphi 0, %s221
    %s239 = sphi 0, %s239
    %s241 = sphi 0, %s239
    %s242 = sphi 0, %s241
    %s256 = sphi 0, %s242
    %s260 = sphi 0, %s260
    %s262 = sphi 0, %s260
    %s263 = sphi 0, %s262
    %s277 = sphi 0, %s263
    %s281 = sphi 0, %s281
    %s283 = sphi 0, %s281
    %s284 = sphi 0, %s283
    %s298 = sphi 0, %s284
    %s302 = sphi 0, %s302
    %s304 = sphi 0, %s302
    %s305 = sphi 0, %s304
    %s319 = sphi 0, %s305
    %s323 = sphi 0, %s323
    %s325 = sphi 0, %s323
    %s326 = sphi 0, %s325
    %s340 = sphi 0, %s326
    %s344 = sphi 0, %s344
    %s346 = sphi 0, %s344
    %s347 = sphi 0, %s346
    %s361 = sphi 0, %s347
    %s365 = sphi 0, %s365
    %s367 = sphi 0, %s365
    %s368 = sphi 0, %s367
    %s382 = sphi 0, %s368
    %s386 = sphi 0, %s386
    %s388 = sphi 0, %s386
    %s389 = sphi 0, %s388
    %s403 = sphi 0, %s389
    %s411 = sphi 0, %s413
    %s414 = sphi 0, %s411
    %s415 = sphi 0, %s414
    %s431 = sphi 0, %s415
  $region4: #{temporal_conv_net.1} parent=0 // loop_header_branch
    %26 = sbr.rel (%p24) target = $region8
  $region5: #{temporal_conv_net.1} parent=0 // loop_body
    %s28 = ssub.s32 %s23, 1
    %s29 = ssub.s32 %s23, 2
    %s36 = sadd.s32 1, %s31
    %p37 = scmp.ge.s32.totalorder %s36, 3
    %s38 = scalar_select %p37, 0, %s36
    %s39 = sadd.s32 1, %s30
    %s40 = scalar_select %p37, %s39, %s30
    %p41 = scmp.ge.s32.totalorder %s40, 2
    %s42 = scalar_select %p41, 0, %s40
    %s43 = ssub.s32 %s30, %s42
    %s44 = ssub.s32 %s31, %s38
    %s45 = sor.u32 %s43, %s44
    %p46 = scmp.eq.s32.totalorder %s45, 0
    %s48 = sadd.s32 %s47, 1
    %s49 = scalar_select %p46, %s47, %s48
    %p52 = pneg %p46
    %p53 = scmp.eq.s32.totalorder %s23, 5
    %p54 = por %p52, %p53
    %p55 = scmp.ne.s32.totalorder %s47, %s50
    %p56 = scmp.eq.s32.totalorder %s23, 0
    %p57 = por %p55, %p56
    %p58 = scmp.ne.s32.totalorder %s47, %s50
    %p59 = scmp.eq.s32.totalorder %s28, 5
    %p60 = por %p58, %p59
    %p61 = scmp.ne.s32.totalorder %s50, %s51
    %p62 = scmp.eq.s32.totalorder %s28, 0
    %p63 = por %p61, %p62
    %p64 = scmp.ne.s32.totalorder %s50, %s51
    %p65 = scmp.eq.s32.totalorder %s29, 5
    %p66 = por %p64, %p65
    %p68 = scmp.ne.s32.totalorder %s51, %s67
    %p69 = scmp.eq.s32.totalorder %s29, 0
    %p70 = por %p68, %p69
    %s72 = sadd.s32 %s71, 1
    %p75 = scmp.eq.s32.totalorder %s23, 5
    %p76 = scmp.ne.s32.totalorder %s71, %s73
    %p77 = scmp.eq.s32.totalorder %s23, 0
    %p78 = por %p76, %p77
    %p79 = scmp.ne.s32.totalorder %s71, %s73
    %p80 = scmp.eq.s32.totalorder %s28, 5
    %p81 = por %p79, %p80
    %p82 = scmp.ne.s32.totalorder %s73, %s74
    %p83 = scmp.eq.s32.totalorder %s28, 0
    %p84 = por %p82, %p83
    %p85 = scmp.ne.s32.totalorder %s73, %s74
    %p86 = scmp.eq.s32.totalorder %s29, 5
    %p87 = por %p85, %p86
    %p89 = scmp.ne.s32.totalorder %s74, %s88
    %p90 = scmp.eq.s32.totalorder %s29, 0
    %p91 = por %p89, %p90
    %s93 = sadd.s32 %s92, 1
    %p96 = scmp.eq.s32.totalorder %s23, 5
    %p97 = scmp.ne.s32.totalorder %s92, %s94
    %p98 = scmp.eq.s32.totalorder %s23, 0
    %p99 = por %p97, %p98
    %p100 = scmp.ne.s32.totalorder %s92, %s94
    %p101 = scmp.eq.s32.totalorder %s28, 5
    %p102 = por %p100, %p101
    %p103 = scmp.ne.s32.totalorder %s94, %s95
    %p104 = scmp.eq.s32.totalorder %s28, 0
    %p105 = por %p103, %p104
    %p106 = scmp.ne.s32.totalorder %s94, %s95
    %p107 = scmp.eq.s32.totalorder %s29, 5
    %p108 = por %p106, %p107
    %p110 = scmp.ne.s32.totalorder %s95, %s109
    %p111 = scmp.eq.s32.totalorder %s29, 0
    %p112 = por %p110, %p111
    %s114 = sadd.s32 %s113, 1
    %p117 = scmp.eq.s32.totalorder %s23, 5
    %p118 = scmp.ne.s32.totalorder %s113, %s115
    %p119 = scmp.eq.s32.totalorder %s23, 0
    %p120 = por %p118, %p119
    %p121 = scmp.ne.s32.totalorder %s113, %s115
    %p122 = scmp.eq.s32.totalorder %s28, 5
    %p123 = por %p121, %p122
    %p124 = scmp.ne.s32.totalorder %s115, %s116
    %p125 = scmp.eq.s32.totalorder %s28, 0
    %p126 = por %p124, %p125
    %p127 = scmp.ne.s32.totalorder %s115, %s116
    %p128 = scmp.eq.s32.totalorder %s29, 5
    %p129 = por %p127, %p128
    %p131 = scmp.ne.s32.totalorder %s116, %s130
    %p132 = scmp.eq.s32.totalorder %s29, 0
    %p133 = por %p131, %p132
    %s135 = sadd.s32 %s134, 1
    %p138 = scmp.eq.s32.totalorder %s23, 5
    %p139 = scmp.ne.s32.totalorder %s134, %s136
    %p140 = scmp.eq.s32.totalorder %s23, 0
    %p141 = por %p139, %p140
    %p142 = scmp.ne.s32.totalorder %s134, %s136
    %p143 = scmp.eq.s32.totalorder %s28, 5
    %p144 = por %p142, %p143
    %p145 = scmp.ne.s32.totalorder %s136, %s137
    %p146 = scmp.eq.s32.totalorder %s28, 0
    %p147 = por %p145, %p146
    %p148 = scmp.ne.s32.totalorder %s136, %s137
    %p149 = scmp.eq.s32.totalorder %s29, 5
    %p150 = por %p148, %p149
    %p152 = scmp.ne.s32.totalorder %s137, %s151
    %p153 = scmp.eq.s32.totalorder %s29, 0
    %p154 = por %p152, %p153
    %s156 = sadd.s32 %s155, 1
    %p159 = scmp.eq.s32.totalorder %s23, 5
    %p160 = scmp.ne.s32.totalorder %s155, %s157
    %p161 = scmp.eq.s32.totalorder %s23, 0
    %p162 = por %p160, %p161
    %p163 = scmp.ne.s32.totalorder %s155, %s157
    %p164 = scmp.eq.s32.totalorder %s28, 5
    %p165 = por %p163, %p164
    %p166 = scmp.ne.s32.totalorder %s157, %s158
    %p167 = scmp.eq.s32.totalorder %s28, 0
    %p168 = por %p166, %p167
    %p169 = scmp.ne.s32.totalorder %s157, %s158
    %p170 = scmp.eq.s32.totalorder %s29, 5
    %p171 = por %p169, %p170
    %p173 = scmp.ne.s32.totalorder %s158, %s172
    %p174 = scmp.eq.s32.totalorder %s29, 0
    %p175 = por %p173, %p174
    %s177 = sadd.s32 %s176, 1
    %p180 = scmp.eq.s32.totalorder %s23, 5
    %p181 = scmp.ne.s32.totalorder %s176, %s178
    %p182 = scmp.eq.s32.totalorder %s23, 0
    %p183 = por %p181, %p182
    %p184 = scmp.ne.s32.totalorder %s176, %s178
    %p185 = scmp.eq.s32.totalorder %s28, 5
    %p186 = por %p184, %p185
    %p187 = scmp.ne.s32.totalorder %s178, %s179
    %p188 = scmp.eq.s32.totalorder %s28, 0
    %p189 = por %p187, %p188
    %p190 = scmp.ne.s32.totalorder %s178, %s179
    %p191 = scmp.eq.s32.totalorder %s29, 5
    %p192 = por %p190, %p191
    %p194 = scmp.ne.s32.totalorder %s179, %s193
    %p195 = scmp.eq.s32.totalorder %s29, 0
    %p196 = por %p194, %p195
    %s198 = sadd.s32 %s197, 1
    %p201 = scmp.eq.s32.totalorder %s23, 5
    %p202 = scmp.ne.s32.totalorder %s197, %s199
    %p203 = scmp.eq.s32.totalorder %s23, 0
    %p204 = por %p202, %p203
    %p205 = scmp.ne.s32.totalorder %s197, %s199
    %p206 = scmp.eq.s32.totalorder %s28, 5
    %p207 = por %p205, %p206
    %p208 = scmp.ne.s32.totalorder %s199, %s200
    %p209 = scmp.eq.s32.totalorder %s28, 0
    %p210 = por %p208, %p209
    %p211 = scmp.ne.s32.totalorder %s199, %s200
    %p212 = scmp.eq.s32.totalorder %s29, 5
    %p213 = por %p211, %p212
    %p215 = scmp.ne.s32.totalorder %s200, %s214
    %p216 = scmp.eq.s32.totalorder %s29, 0
    %p217 = por %p215, %p216
    %s219 = sadd.s32 %s218, 1
    %p222 = scmp.eq.s32.totalorder %s23, 5
    %p223 = scmp.ne.s32.totalorder %s218, %s220
    %p224 = scmp.eq.s32.totalorder %s23, 0
    %p225 = por %p223, %p224
    %p226 = scmp.ne.s32.totalorder %s218, %s220
    %p227 = scmp.eq.s32.totalorder %s28, 5
    %p228 = por %p226, %p227
    %p229 = scmp.ne.s32.totalorder %s220, %s221
    %p230 = scmp.eq.s32.totalorder %s28, 0
    %p231 = por %p229, %p230
    %p232 = scmp.ne.s32.totalorder %s220, %s221
    %p233 = scmp.eq.s32.totalorder %s29, 5
    %p234 = por %p232, %p233
    %p236 = scmp.ne.s32.totalorder %s221, %s235
    %p237 = scmp.eq.s32.totalorder %s29, 0
    %p238 = por %p236, %p237
    %s240 = sadd.s32 %s239, 1
    %p243 = scmp.eq.s32.totalorder %s23, 5
    %p244 = scmp.ne.s32.totalorder %s239, %s241
    %p245 = scmp.eq.s32.totalorder %s23, 0
    %p246 = por %p244, %p245
    %p247 = scmp.ne.s32.totalorder %s239, %s241
    %p248 = scmp.eq.s32.totalorder %s28, 5
    %p249 = por %p247, %p248
    %p250 = scmp.ne.s32.totalorder %s241, %s242
    %p251 = scmp.eq.s32.totalorder %s28, 0
    %p252 = por %p250, %p251
    %p253 = scmp.ne.s32.totalorder %s241, %s242
    %p254 = scmp.eq.s32.totalorder %s29, 5
    %p255 = por %p253, %p254
    %p257 = scmp.ne.s32.totalorder %s242, %s256
    %p258 = scmp.eq.s32.totalorder %s29, 0
    %p259 = por %p257, %p258
    %s261 = sadd.s32 %s260, 1
    %p264 = scmp.eq.s32.totalorder %s23, 5
    %p265 = scmp.ne.s32.totalorder %s260, %s262
    %p266 = scmp.eq.s32.totalorder %s23, 0
    %p267 = por %p265, %p266
    %p268 = scmp.ne.s32.totalorder %s260, %s262
    %p269 = scmp.eq.s32.totalorder %s28, 5
    %p270 = por %p268, %p269
    %p271 = scmp.ne.s32.totalorder %s262, %s263
    %p272 = scmp.eq.s32.totalorder %s28, 0
    %p273 = por %p271, %p272
    %p274 = scmp.ne.s32.totalorder %s262, %s263
    %p275 = scmp.eq.s32.totalorder %s29, 5
    %p276 = por %p274, %p275
    %p278 = scmp.ne.s32.totalorder %s263, %s277
    %p279 = scmp.eq.s32.totalorder %s29, 0
    %p280 = por %p278, %p279
    %s282 = sadd.s32 %s281, 1
    %p285 = scmp.eq.s32.totalorder %s23, 5
    %p286 = scmp.ne.s32.totalorder %s281, %s283
    %p287 = scmp.eq.s32.totalorder %s23, 0
    %p288 = por %p286, %p287
    %p289 = scmp.ne.s32.totalorder %s281, %s283
    %p290 = scmp.eq.s32.totalorder %s28, 5
    %p291 = por %p289, %p290
    %p292 = scmp.ne.s32.totalorder %s283, %s284
    %p293 = scmp.eq.s32.totalorder %s28, 0
    %p294 = por %p292, %p293
    %p295 = scmp.ne.s32.totalorder %s283, %s284
    %p296 = scmp.eq.s32.totalorder %s29, 5
    %p297 = por %p295, %p296
    %p299 = scmp.ne.s32.totalorder %s284, %s298
    %p300 = scmp.eq.s32.totalorder %s29, 0
    %p301 = por %p299, %p300
    %s303 = sadd.s32 %s302, 1
    %p306 = scmp.eq.s32.totalorder %s23, 5
    %p307 = scmp.ne.s32.totalorder %s302, %s304
    %p308 = scmp.eq.s32.totalorder %s23, 0
    %p309 = por %p307, %p308
    %p310 = scmp.ne.s32.totalorder %s302, %s304
    %p311 = scmp.eq.s32.totalorder %s28, 5
    %p312 = por %p310, %p311
    %p313 = scmp.ne.s32.totalorder %s304, %s305
    %p314 = scmp.eq.s32.totalorder %s28, 0
    %p315 = por %p313, %p314
    %p316 = scmp.ne.s32.totalorder %s304, %s305
    %p317 = scmp.eq.s32.totalorder %s29, 5
    %p318 = por %p316, %p317
    %p320 = scmp.ne.s32.totalorder %s305, %s319
    %p321 = scmp.eq.s32.totalorder %s29, 0
    %p322 = por %p320, %p321
    %s324 = sadd.s32 %s323, 1
    %p327 = scmp.eq.s32.totalorder %s23, 5
    %p328 = scmp.ne.s32.totalorder %s323, %s325
    %p329 = scmp.eq.s32.totalorder %s23, 0
    %p330 = por %p328, %p329
    %p331 = scmp.ne.s32.totalorder %s323, %s325
    %p332 = scmp.eq.s32.totalorder %s28, 5
    %p333 = por %p331, %p332
    %p334 = scmp.ne.s32.totalorder %s325, %s326
    %p335 = scmp.eq.s32.totalorder %s28, 0
    %p336 = por %p334, %p335
    %p337 = scmp.ne.s32.totalorder %s325, %s326
    %p338 = scmp.eq.s32.totalorder %s29, 5
    %p339 = por %p337, %p338
    %p341 = scmp.ne.s32.totalorder %s326, %s340
    %p342 = scmp.eq.s32.totalorder %s29, 0
    %p343 = por %p341, %p342
    %s345 = sadd.s32 %s344, 1
    %p348 = scmp.eq.s32.totalorder %s23, 5
    %p349 = scmp.ne.s32.totalorder %s344, %s346
    %p350 = scmp.eq.s32.totalorder %s23, 0
    %p351 = por %p349, %p350
    %p352 = scmp.ne.s32.totalorder %s344, %s346
    %p353 = scmp.eq.s32.totalorder %s28, 5
    %p354 = por %p352, %p353
    %p355 = scmp.ne.s32.totalorder %s346, %s347
    %p356 = scmp.eq.s32.totalorder %s28, 0
    %p357 = por %p355, %p356
    %p358 = scmp.ne.s32.totalorder %s346, %s347
    %p359 = scmp.eq.s32.totalorder %s29, 5
    %p360 = por %p358, %p359
    %p362 = scmp.ne.s32.totalorder %s347, %s361
    %p363 = scmp.eq.s32.totalorder %s29, 0
    %p364 = por %p362, %p363
    %s366 = sadd.s32 %s365, 1
    %p369 = scmp.eq.s32.totalorder %s23, 5
    %p370 = scmp.ne.s32.totalorder %s365, %s367
    %p371 = scmp.eq.s32.totalorder %s23, 0
    %p372 = por %p370, %p371
    %p373 = scmp.ne.s32.totalorder %s365, %s367
    %p374 = scmp.eq.s32.totalorder %s28, 5
    %p375 = por %p373, %p374
    %p376 = scmp.ne.s32.totalorder %s367, %s368
    %p377 = scmp.eq.s32.totalorder %s28, 0
    %p378 = por %p376, %p377
    %p379 = scmp.ne.s32.totalorder %s367, %s368
    %p380 = scmp.eq.s32.totalorder %s29, 5
    %p381 = por %p379, %p380
    %p383 = scmp.ne.s32.totalorder %s368, %s382
    %p384 = scmp.eq.s32.totalorder %s29, 0
    %p385 = por %p383, %p384
    %s387 = sadd.s32 %s386, 1
    %p390 = scmp.eq.s32.totalorder %s23, 5
    %p391 = scmp.ne.s32.totalorder %s386, %s388
    %p392 = scmp.eq.s32.totalorder %s23, 0
    %p393 = por %p391, %p392
    %p394 = scmp.ne.s32.totalorder %s386, %s388
    %p395 = scmp.eq.s32.totalorder %s28, 5
    %p396 = por %p394, %p395
    %p397 = scmp.ne.s32.totalorder %s388, %s389
    %p398 = scmp.eq.s32.totalorder %s28, 0
    %p399 = por %p397, %p398
    %p400 = scmp.ne.s32.totalorder %s388, %s389
    %p401 = scmp.eq.s32.totalorder %s29, 5
    %p402 = por %p400, %p401
    %p404 = scmp.ne.s32.totalorder %s389, %s403
    %p405 = scmp.eq.s32.totalorder %s29, 0
    %p406 = por %p404, %p405
    %s407 = ssub.s32 %s30, %s42
    %s408 = ssub.s32 %s31, %s38
    %s409 = sor.u32 %s407, %s408
    %p410 = scmp.eq.s32.totalorder %s409, 0
    %s412 = sadd.s32 %s411, 1
    %s413 = scalar_select %p410, %s411, %s412
    %p416 = pneg %p410
    %p417 = scmp.eq.s32.totalorder %s23, 5
    %p418 = por %p416, %p417
    %p419 = scmp.ne.s32.totalorder %s411, %s414
    %p420 = scmp.eq.s32.totalorder %s23, 0
    %p421 = por %p419, %p420
    %p422 = scmp.ne.s32.totalorder %s411, %s414
    %p423 = scmp.eq.s32.totalorder %s28, 5
    %p424 = por %p422, %p423
    %p425 = scmp.ne.s32.totalorder %s414, %s415
    %p426 = scmp.eq.s32.totalorder %s28, 0
    %p427 = por %p425, %p426
    %p428 = scmp.ne.s32.totalorder %s414, %s415
    %p429 = scmp.eq.s32.totalorder %s29, 5
    %p430 = por %p428, %p429
    %p432 = scmp.ne.s32.totalorder %s415, %s431
    %p433 = scmp.eq.s32.totalorder %s29, 0
    %p434 = por %p432, %p433
    %p435 = scmp.le.s32.totalorder 1, %s23
    %p436 = scmp.lt.s32.totalorder %s23, 7
    %p437 = pnand %p435, %p436
    %p438 = pneg %p437
    // Predicated region
    $region9: #{temporal_conv_net.1} parent=5 // pred_check
      _
    $region10: #{temporal_conv_net.1} parent=5 // pred_check_branch
      %440 = sbr.rel (%p437) target = $region12
    $region11: #{temporal_conv_net.1} parent=5 // pred_region
      %s441 = ssub.s32 %s23, 1
      // Predicated region
      $region13: #{temporal_conv_net.1} parent=11 // pred_check
        %p442 = pneg %p84
      $region14: #{temporal_conv_net.1} parent=11 // pred_check_branch
        %444 = sbr.rel (%p442) target = $region16
      $region15: #{temporal_conv_net.1} parent=11 // pred_region
        _
      $region16: #{temporal_conv_net.1} parent=11 // pred_fallthru
        _
      // Predicated region
      $region17: #{temporal_conv_net.1} parent=11 // pred_check
        %p445 = pneg %p105
      $region18: #{temporal_conv_net.1} parent=11 // pred_check_branch
        %447 = sbr.rel (%p445) target = $region20
      $region19: #{temporal_conv_net.1} parent=11 // pred_region
        _
      $region20: #{temporal_conv_net.1} parent=11 // pred_fallthru
        _
      // Predicated region
      $region21: #{temporal_conv_net.1} parent=11 // pred_check
        %p448 = pneg %p126
      $region22: #{temporal_conv_net.1} parent=11 // pred_check_branch
        %450 = sbr.rel (%p448) target = $region24
      $region23: #{temporal_conv_net.1} parent=11 // pred_region
        _
      $region24: #{temporal_conv_net.1} parent=11 // pred_fallthru
        _
      // Predicated region
      $region25: #{temporal_conv_net.1} parent=11 // pred_check
        %p451 = pneg %p147
      $region26: #{temporal_conv_net.1} parent=11 // pred_check_branch
        %453 = sbr.rel (%p451) target = $region28
      $region27: #{temporal_conv_net.1} parent=11 // pred_region
        _
      $region28: #{temporal_conv_net.1} parent=11 // pred_fallthru
        _
      // Predicated region
      $region29: #{temporal_conv_net.1} parent=11 // pred_check
        %p454 = pneg %p168
      $region30: #{temporal_conv_net.1} parent=11 // pred_check_branch
        %456 = sbr.rel (%p454) target = $region32
      $region31: #{temporal_conv_net.1} parent=11 // pred_region
        _
      $region32: #{temporal_conv_net.1} parent=11 // pred_fallthru
        _
      // Predicated region
      $region33: #{temporal_conv_net.1} parent=11 // pred_check
        %p457 = pneg %p189
      $region34: #{temporal_conv_net.1} parent=11 // pred_check_branch
        %459 = sbr.rel (%p457) target = $region36
      $region35: #{temporal_conv_net.1} parent=11 // pred_region
        _
      $region36: #{temporal_conv_net.1} parent=11 // pred_fallthru
        _
      // Predicated region
      $region37: #{temporal_conv_net.1} parent=11 // pred_check
        %p460 = pneg %p210
      $region38: #{temporal_conv_net.1} parent=11 // pred_check_branch
        %462 = sbr.rel (%p460) target = $region40
      $region39: #{temporal_conv_net.1} parent=11 // pred_region
        _
      $region40: #{temporal_conv_net.1} parent=11 // pred_fallthru
        _
      // Predicated region
      $region41: #{temporal_conv_net.1} parent=11 // pred_check
        %p463 = pneg %p231
      $region42: #{temporal_conv_net.1} parent=11 // pred_check_branch
        %465 = sbr.rel (%p463) target = $region44
      $region43: #{temporal_conv_net.1} parent=11 // pred_region
        _
      $region44: #{temporal_conv_net.1} parent=11 // pred_fallthru
        _
      // Predicated region
      $region45: #{temporal_conv_net.1} parent=11 // pred_check
        %p466 = pneg %p252
      $region46: #{temporal_conv_net.1} parent=11 // pred_check_branch
        %468 = sbr.rel (%p466) target = $region48
      $region47: #{temporal_conv_net.1} parent=11 // pred_region
        _
      $region48: #{temporal_conv_net.1} parent=11 // pred_fallthru
        _
      // Predicated region
      $region49: #{temporal_conv_net.1} parent=11 // pred_check
        %p469 = pneg %p273
      $region50: #{temporal_conv_net.1} parent=11 // pred_check_branch
        %471 = sbr.rel (%p469) target = $region52
      $region51: #{temporal_conv_net.1} parent=11 // pred_region
        _
      $region52: #{temporal_conv_net.1} parent=11 // pred_fallthru
        _
      // Predicated region
      $region53: #{temporal_conv_net.1} parent=11 // pred_check
        %p472 = pneg %p294
      $region54: #{temporal_conv_net.1} parent=11 // pred_check_branch
        %474 = sbr.rel (%p472) target = $region56
      $region55: #{temporal_conv_net.1} parent=11 // pred_region
        _
      $region56: #{temporal_conv_net.1} parent=11 // pred_fallthru
        _
      // Predicated region
      $region57: #{temporal_conv_net.1} parent=11 // pred_check
        %p475 = pneg %p315
      $region58: #{temporal_conv_net.1} parent=11 // pred_check_branch
        %477 = sbr.rel (%p475) target = $region60
      $region59: #{temporal_conv_net.1} parent=11 // pred_region
        _
      $region60: #{temporal_conv_net.1} parent=11 // pred_fallthru
        _
      // Predicated region
      $region61: #{temporal_conv_net.1} parent=11 // pred_check
        %p478 = pneg %p336
      $region62: #{temporal_conv_net.1} parent=11 // pred_check_branch
        %480 = sbr.rel (%p478) target = $region64
      $region63: #{temporal_conv_net.1} parent=11 // pred_region
        _
      $region64: #{temporal_conv_net.1} parent=11 // pred_fallthru
        _
      // Predicated region
      $region65: #{temporal_conv_net.1} parent=11 // pred_check
        %p481 = pneg %p357
      $region66: #{temporal_conv_net.1} parent=11 // pred_check_branch
        %483 = sbr.rel (%p481) target = $region68
      $region67: #{temporal_conv_net.1} parent=11 // pred_region
        _
      $region68: #{temporal_conv_net.1} parent=11 // pred_fallthru
        _
      // Predicated region
      $region69: #{temporal_conv_net.1} parent=11 // pred_check
        %p484 = pneg %p378
      $region70: #{temporal_conv_net.1} parent=11 // pred_check_branch
        %486 = sbr.rel (%p484) target = $region72
      $region71: #{temporal_conv_net.1} parent=11 // pred_region
        _
      $region72: #{temporal_conv_net.1} parent=11 // pred_fallthru
        _
      // Predicated region
      $region73: #{temporal_conv_net.1} parent=11 // pred_check
        %p487 = pneg %p399
      $region74: #{temporal_conv_net.1} parent=11 // pred_check_branch
        %489 = sbr.rel (%p487) target = $region76
      $region75: #{temporal_conv_net.1} parent=11 // pred_region
        _
      $region76: #{temporal_conv_net.1} parent=11 // pred_fallthru
        _
    $region12: #{temporal_conv_net.1} parent=5 // pred_fallthru
      _
    %p490 = scmp.lt.s32.totalorder %s23, 6
    // Predicated region
    $region77: #{temporal_conv_net.1} parent=5 // pred_check
      %p491 = pneg %p490
    $region78: #{temporal_conv_net.1} parent=5 // pred_check_branch
      %493 = sbr.rel (%p491) target = $region80
    $region79: #{temporal_conv_net.1} parent=5 // pred_region
      // Predicated region
      $region81: #{temporal_conv_net.1} parent=79 // pred_check
        %p494 = pneg %p57
      $region82: #{temporal_conv_net.1} parent=79 // pred_check_branch
        %496 = sbr.rel (%p494) target = $region84
      $region83: #{temporal_conv_net.1} parent=79 // pred_region
        %s497 = smul.u32 2, %s31
        %p498 = scmp.lt.s32.totalorder %s30, 1
        %s499 = scalar_select %p498, %s30, 1
        %p500 = scmp.lt.s32.totalorder %s497, 5
        %s501 = scalar_select %p500, %s497, 5
        %s502 = smul.addr %s499, 6
        %s503 = sadd.s32 %s501, %s502
        %s504 = smul.addr %s503, 8
        %s505 = scalar_lea.vmem %s0, %s504
        %s506 = smul.u32 2, %s31
      $region84: #{temporal_conv_net.1} parent=79 // pred_fallthru
        _
    $region80: #{temporal_conv_net.1} parent=5 // pred_fallthru
      _
    %p507 = scmp.le.s32.totalorder 1, %s23
    %p508 = scmp.lt.s32.totalorder %s23, 7
    %p509 = pnand %p507, %p508
    %p510 = pneg %p509
    // Predicated region
    $region85: #{temporal_conv_net.1} parent=5 // pred_check
      _
    $region86: #{temporal_conv_net.1} parent=5 // pred_check_branch
      %512 = sbr.rel (%p509) target = $region88
    $region87: #{temporal_conv_net.1} parent=5 // pred_region
      %s513 = ssub.s32 %s23, 1
      %s514 = smul.u32 2, %s33
      %p515 = scmp.lt.s32.totalorder %s32, 1
      %s516 = scalar_select %p515, %s32, 1
      %p517 = scmp.lt.s32.totalorder %s514, 5
      %s518 = scalar_select %p517, %s514, 5
      %s519 = smul.addr %s516, 6
      %s520 = sadd.s32 %s518, %s519
      %s521 = smul.addr %s520, 8
      %s522 = scalar_lea.vmem %s0, %s521
      %p523 = pneg %p63
      %p524 = pneg %p60
      %p525 = pneg %p84
      %p526 = pneg %p81
      %p527 = pneg %p105
      %p528 = pneg %p102
      %p529 = pneg %p126
      %p530 = pneg %p123
      %p531 = pneg %p147
      %p532 = pneg %p144
      %p533 = pneg %p168
      %p534 = pneg %p165
      %p535 = pneg %p189
      %p536 = pneg %p186
      %p537 = pneg %p210
      %p538 = pneg %p207
      %p539 = pneg %p231
      %p540 = pneg %p228
      %p541 = pneg %p252
      %p542 = pneg %p249
      %p543 = pneg %p273
      %p544 = pneg %p270
      %p545 = pneg %p294
      %p546 = pneg %p291
      %p547 = pneg %p315
      %p548 = pneg %p312
      %p549 = pneg %p336
      %p550 = pneg %p333
      %p551 = pneg %p357
      %p552 = pneg %p354
      %p553 = pneg %p378
      %p554 = pneg %p375
      %p555 = pneg %p399
      %p556 = pneg %p396
      %p557 = pneg %p427
      %p558 = pneg %p424
      %s559 = smul.u32 2, %s33
      %p560 = scmp.lt.s32.totalorder %s32, 1
      %s561 = scalar_select %p560, %s32, 1
      %p562 = scmp.lt.s32.totalorder %s559, 5
      %s563 = scalar_select %p562, %s559, 5
      %s564 = smul.addr %s561, 6
      %s565 = sadd.s32 %s563, %s564
      %s566 = smul.addr %s565, 8
      %s567 = scalar_lea.vmem %s17, %s566
      %s568 = smul.u32 2, %s33
      %p569 = scmp.lt.s32.totalorder %s32, 1
      %s570 = scalar_select %p569, %s32, 1
      %p571 = scmp.lt.s32.totalorder %s568, 5
      %s572 = scalar_select %p571, %s568, 5
      %s573 = smul.addr %s570, 6
      %s574 = sadd.s32 %s572, %s573
      %s575 = smul.addr %s574, 8
      %s576 = scalar_lea.vmem %s0, %s575
      %s577 = smul.u32 2, %s33
      %s578 = smul.u32 2, %s33
      %p579 = scmp.lt.s32.totalorder %s32, 1
      %s580 = scalar_select %p579, %s32, 1
      %p581 = scmp.lt.s32.totalorder %s578, 5
      %s582 = scalar_select %p581, %s578, 5
      %s583 = smul.addr %s580, 6
      %s584 = sadd.s32 %s582, %s583
      %s585 = smul.addr %s584, 8
      %s586 = scalar_lea.vmem %s17, %s585
      %s587 = smul.u32 2, %s33
      %p589 = scmp.eq.s32.totalorder %s33, 0
      // Predicated region
      $region89: #{temporal_conv_net.1} parent=87 // pred_check
        %p590 = pneg %p589
      $region90: #{temporal_conv_net.1} parent=87 // pred_check_branch
        %592 = sbr.rel (%p590) target = $region92
      $region91: #{temporal_conv_net.1} parent=87 // pred_region
        %593 = vst [vmem:[#allocation2 + $0x7] sm:$0x1] 0.0
        %594 = vst [vmem:[#allocation3 + $0x7] sm:$0x1] 0.0
        %595 = vst [vmem:[#allocation4 + $0x6] sm:$0x3] 0.0
        %596 = vst [vmem:[#allocation5 + $0x6] sm:$0x3] 0.0
        %597 = vst [vmem:[#allocation6 + $0x4] sm:$0xf] 0.0
        %598 = vst [vmem:[#allocation7 + $0x4] sm:$0xf] 0.0
      $region92: #{temporal_conv_net.1} parent=87 // pred_fallthru
        _
      %v599 = vld [vmem:[%s576] sm:$0xff]
      %v600 = vld [vmem:[%s576 + $0x8] sm:$0xff]
      %601 = vst [vmem:[#allocation2 + $0x8] sm:$0xff] %v599
      %602 = vst [vmem:[#allocation2 + $0x10] sm:$0xff] %v600
      %v603 = vld [vmem:[#allocation2 + $0x7] sm:$0xff]
      %v604 = vld [vmem:[#allocation2 + $0xf] sm:$0xff]
      %v605 = vpack.c.bf16 %v604, %v603
      %v607 = vunpack.c.l.b16 %v605
      %v608 = vunpack.c.h.b16 %v605
      %v609 = vpack.c.b16 %v607, %v607
      %v610 = vpack.c.b16 %v608, %v608
      %613 = vst [vmem:[#allocation8] sm:$0xf] %v609
      %614 = vst [vmem:[#allocation8 + $0x8] sm:$0xf] %v610
      %v615 = vld [vmem:[#allocation2 + $0x8] sm:$0xff]
      %v616 = vld [vmem:[#allocation2 + $0x10] sm:$0xff]
      %v617 = vpack.c.bf16 %v616, %v615
      %v619 = vunpack.c.l.b16 %v617
      %v620 = vunpack.c.h.b16 %v617
      %v621 = vpack.c.b16 %v619, %v619
      %v622 = vpack.c.b16 %v620, %v620
      %625 = vst [vmem:[#allocation8 + $0x4] sm:$0xf] %v621
      %626 = vst [vmem:[#allocation8 + $0xc] sm:$0xf] %v622
      %v627 = vld [vmem:[#allocation8] sm:$0xff]
      %v628 = vld [vmem:[#allocation8 + $0x8] sm:$0xff]
      %v629 = vld [vmem:[%s1] sm:$0xf]
      %v630 = vld [vmem:[%s1 + $0x4] sm:$0xf]
      %v631 = vld [vmem:[%s1 + $0x8] sm:$0xf]
      %v632 = vld [vmem:[%s1 + $0xc] sm:$0xf]
      %v633 = vld [vmem:[%s1 + $0x10] sm:$0xf]
      %v634 = vld [vmem:[%s1 + $0x14] sm:$0xf]
      %v635 = vld [vmem:[%s1 + $0x18] sm:$0xf]
      %v636 = vld [vmem:[%s1 + $0x1c] sm:$0xf]
      %v637 = vld [vmem:[%s1 + $0x20] sm:$0xf]
      %v638 = vld [vmem:[%s1 + $0x24] sm:$0xf]
      %v639 = vld [vmem:[%s1 + $0x28] sm:$0xf]
      %v640 = vld [vmem:[%s1 + $0x2c] sm:$0xf]
      %v641 = vld [vmem:[%s1 + $0x30] sm:$0xf]
      %v642 = vld [vmem:[%s1 + $0x34] sm:$0xf]
      %v643 = vld [vmem:[%s1 + $0x38] sm:$0xf]
      %v644 = vld [vmem:[%s1 + $0x3c] sm:$0xf]
      %v645 = vld [vmem:[%s1 + $0x40] sm:$0xf]
      %v646 = vld [vmem:[%s1 + $0x44] sm:$0xf]
      %v647 = vld [vmem:[%s1 + $0x48] sm:$0xf]
      %v648 = vld [vmem:[%s1 + $0x4c] sm:$0xf]
      %v649 = vld [vmem:[%s1 + $0x50] sm:$0xf]
      %v650 = vld [vmem:[%s1 + $0x54] sm:$0xf]
      %v651 = vld [vmem:[%s1 + $0x58] sm:$0xf]
      %v652 = vld [vmem:[%s1 + $0x5c] sm:$0xf]
      %v653 = vld [vmem:[%s1 + $0x60] sm:$0xf]
      %v654 = vld [vmem:[%s1 + $0x64] sm:$0xf]
      %v655 = vld [vmem:[%s1 + $0x68] sm:$0xf]
      %v656 = vld [vmem:[%s1 + $0x6c] sm:$0xf]
      %v657 = vld [vmem:[%s1 + $0x70] sm:$0xf]
      %v658 = vld [vmem:[%s1 + $0x74] sm:$0xf]
      %v659 = vld [vmem:[%s1 + $0x78] sm:$0xf]
      %v660 = vld [vmem:[%s1 + $0x7c] sm:$0xf]
      %v661 = vld [vmem:[%s2] sm:$0x1]
      %v663 = vlaneseq
      %v664 = vshrl.u32 %v663, 7
      %v665 = vsub.s32 0, %v664
      %v666 = vrot.slane %v661, %v665
      %v670 = vunpack.c.l.b16 %v627
      %v671 = vunpack.c.h.b16 %v627
      %v672 = vunpack.c.l.b16 %v628
      %v673 = vunpack.c.h.b16 %v628
      %v674 = vpack.c.b16 %v672, %v670
      %v675 = vpack.c.b16 %v673, %v671
      %v710 = vunpack.c.l.b16 %v629
      %v711 = vunpack.c.l.b16 %v630
      %v712 = vunpack.c.l.b16 %v631
      %v713 = vunpack.c.l.b16 %v632
      %v714 = vunpack.c.l.b16 %v633
      %v715 = vunpack.c.l.b16 %v634
      %v716 = vunpack.c.l.b16 %v635
      %v717 = vunpack.c.l.b16 %v636
      %v718 = vunpack.c.l.b16 %v637
      %v719 = vunpack.c.l.b16 %v638
      %v720 = vunpack.c.l.b16 %v639
      %v721 = vunpack.c.l.b16 %v640
      %v722 = vunpack.c.l.b16 %v641
      %v723 = vunpack.c.l.b16 %v642
      %v724 = vunpack.c.l.b16 %v643
      %v725 = vunpack.c.l.b16 %v644
      %v726 = vunpack.c.l.b16 %v645
      %v727 = vunpack.c.l.b16 %v646
      %v728 = vunpack.c.l.b16 %v647
      %v729 = vunpack.c.l.b16 %v648
      %v730 = vunpack.c.l.b16 %v649
      %v731 = vunpack.c.l.b16 %v650
      %v732 = vunpack.c.l.b16 %v651
      %v733 = vunpack.c.l.b16 %v652
      %v734 = vunpack.c.l.b16 %v653
      %v735 = vunpack.c.l.b16 %v654
      %v736 = vunpack.c.l.b16 %v655
      %v737 = vunpack.c.l.b16 %v656
      %v738 = vunpack.c.l.b16 %v657
      %v739 = vunpack.c.l.b16 %v658
      %v740 = vunpack.c.l.b16 %v659
      %v741 = vunpack.c.l.b16 %v660
      %v742 = vpack.c.b16 %v711, %v710
      %v743 = vpack.c.b16 %v713, %v712
      %v744 = vpack.c.b16 %v715, %v714
      %v745 = vpack.c.b16 %v717, %v716
      %v746 = vpack.c.b16 %v719, %v718
      %v747 = vpack.c.b16 %v721, %v720
      %v748 = vpack.c.b16 %v723, %v722
      %v749 = vpack.c.b16 %v725, %v724
      %v750 = vpack.c.b16 %v727, %v726
      %v751 = vpack.c.b16 %v729, %v728
      %v752 = vpack.c.b16 %v731, %v730
      %v753 = vpack.c.b16 %v733, %v732
      %v754 = vpack.c.b16 %v735, %v734
      %v755 = vpack.c.b16 %v737, %v736
      %v756 = vpack.c.b16 %v739, %v738
      %v757 = vpack.c.b16 %v741, %v740
      %774 = vmatprep.subr.bf16.mxu0 0
      %775 = vmatpush1.bf16.msra.mxu0 %v749
      %776 = vmatprep.subr.bf16.mxu0 0
      %777 = vmatpush1.bf16.msra.mxu0 %v748
      %778 = vmatprep.subr.bf16.mxu0 0
      %779 = vmatpush1.bf16.msra.mxu0 %v747
      %780 = vmatprep.subr.bf16.mxu0 0
      %781 = vmatpush1.bf16.msra.mxu0 %v746
      %782 = vmatprep.subr.bf16.mxu0 0
      %783 = vmatpush1.bf16.msra.mxu0 %v745
      %784 = vmatprep.subr.bf16.mxu0 0
      %785 = vmatpush1.bf16.msra.mxu0 %v744
      %786 = vmatprep.subr.bf16.mxu0 0
      %787 = vmatpush1.bf16.msra.mxu0 %v743
      %788 = vmatprep.subr.bf16.mxu0 0
      %789 = vmatpush1.bf16.msra.mxu0 %v742
      %790 = vmatprep.subr.bf16.mxu0 0
      %791 = vmatpush2.bf16.msra.mxu0 %v757
      %792 = vmatprep.subr.bf16.mxu0 0
      %793 = vmatpush2.bf16.msra.mxu0 %v756
      %794 = vmatprep.subr.bf16.mxu0 0
      %795 = vmatpush2.bf16.msra.mxu0 %v755
      %796 = vmatprep.subr.bf16.mxu0 0
      %797 = vmatpush2.bf16.msra.mxu0 %v754
      %798 = vmatprep.subr.bf16.mxu0 0
      %799 = vmatpush2.bf16.msra.mxu0 %v753
      %800 = vmatprep.subr.bf16.mxu0 0
      %801 = vmatpush2.bf16.msra.mxu0 %v752
      %802 = vmatprep.subr.bf16.mxu0 0
      %803 = vmatpush2.bf16.msra.mxu0 %v751
      %804 = vmatprep.subr.bf16.mxu0 0
      %805 = vmatpush2.bf16.msra.mxu0 %v750
      %806 = vmatprep.mubr.bf16.mxu0 %v675
      %807 = vmatmul.mubr.bf16.gmra.mxu0 %v674
      %v808 = vpop.f32.mrf.mxu0
      %v809 = vadd.f32 %v666, %v808
      %v810 = vpop.f32.mrf.mxu0
      %v811 = vpop.f32.mrf.mxu0
      %v812 = vadd.f32 %v666, %v811
      %v813 = vpop.f32.mrf.mxu0
      %814 = vdwg.mxu0
      %v815 = vmax.f32 %v809, 0.0
      %v816 = vmax.f32 %v812, 0.0
      %817 = vst [vmem:[#allocation3 + $0x8] sm:$0xff] %v815
      %818 = vst [vmem:[#allocation3 + $0x10] sm:$0xff] %v816
      %v819 = vld [vmem:[#allocation3 + $0x7] sm:$0xff]
      %v820 = vld [vmem:[#allocation3 + $0xf] sm:$0xff]
      %v821 = vpack.c.bf16 %v820, %v819
      %v823 = vunpack.c.l.b16 %v821
      %v824 = vunpack.c.h.b16 %v821
      %v825 = vpack.c.b16 %v823, %v823
      %v826 = vpack.c.b16 %v824, %v824
      %829 = vst [vmem:[#allocation8] sm:$0xf] %v825
      %830 = vst [vmem:[#allocation8 + $0x8] sm:$0xf] %v826
      %v831 = vld [vmem:[#allocation3 + $0x8] sm:$0xff]
      %v832 = vld [vmem:[#allocation3 + $0x10] sm:$0xff]
      %v833 = vpack.c.bf16 %v832, %v831
      %v835 = vunpack.c.l.b16 %v833
      %v836 = vunpack.c.h.b16 %v833
      %v837 = vpack.c.b16 %v835, %v835
      %v838 = vpack.c.b16 %v836, %v836
      %841 = vst [vmem:[#allocation8 + $0x4] sm:$0xf] %v837
      %842 = vst [vmem:[#allocation8 + $0xc] sm:$0xf] %v838
      %v843 = vld [vmem:[#allocation8] sm:$0xff]
      %v844 = vld [vmem:[#allocation8 + $0x8] sm:$0xff]
      %v845 = vld [vmem:[%s3] sm:$0xf]
      %v846 = vld [vmem:[%s3 + $0x4] sm:$0xf]
      %v847 = vld [vmem:[%s3 + $0x8] sm:$0xf]
      %v848 = vld [vmem:[%s3 + $0xc] sm:$0xf]
      %v849 = vld [vmem:[%s3 + $0x10] sm:$0xf]
      %v850 = vld [vmem:[%s3 + $0x14] sm:$0xf]
      %v851 = vld [vmem:[%s3 + $0x18] sm:$0xf]
      %v852 = vld [vmem:[%s3 + $0x1c] sm:$0xf]
      %v853 = vld [vmem:[%s3 + $0x20] sm:$0xf]
      %v854 = vld [vmem:[%s3 + $0x24] sm:$0xf]
      %v855 = vld [vmem:[%s3 + $0x28] sm:$0xf]
      %v856 = vld [vmem:[%s3 + $0x2c] sm:$0xf]
      %v857 = vld [vmem:[%s3 + $0x30] sm:$0xf]
      %v858 = vld [vmem:[%s3 + $0x34] sm:$0xf]
      %v859 = vld [vmem:[%s3 + $0x38] sm:$0xf]
      %v860 = vld [vmem:[%s3 + $0x3c] sm:$0xf]
      %v861 = vld [vmem:[%s3 + $0x40] sm:$0xf]
      %v862 = vld [vmem:[%s3 + $0x44] sm:$0xf]
      %v863 = vld [vmem:[%s3 + $0x48] sm:$0xf]
      %v864 = vld [vmem:[%s3 + $0x4c] sm:$0xf]
      %v865 = vld [vmem:[%s3 + $0x50] sm:$0xf]
      %v866 = vld [vmem:[%s3 + $0x54] sm:$0xf]
      %v867 = vld [vmem:[%s3 + $0x58] sm:$0xf]
      %v868 = vld [vmem:[%s3 + $0x5c] sm:$0xf]
      %v869 = vld [vmem:[%s3 + $0x60] sm:$0xf]
      %v870 = vld [vmem:[%s3 + $0x64] sm:$0xf]
      %v871 = vld [vmem:[%s3 + $0x68] sm:$0xf]
      %v872 = vld [vmem:[%s3 + $0x6c] sm:$0xf]
      %v873 = vld [vmem:[%s3 + $0x70] sm:$0xf]
      %v874 = vld [vmem:[%s3 + $0x74] sm:$0xf]
      %v875 = vld [vmem:[%s3 + $0x78] sm:$0xf]
      %v876 = vld [vmem:[%s3 + $0x7c] sm:$0xf]
      %v877 = vld [vmem:[%s4] sm:$0x1]
      %v879 = vlaneseq
      %v880 = vshrl.u32 %v879, 7
      %v881 = vsub.s32 0, %v880
      %v882 = vrot.slane %v877, %v881
      %v886 = vunpack.c.l.b16 %v843
      %v887 = vunpack.c.h.b16 %v843
      %v888 = vunpack.c.l.b16 %v844
      %v889 = vunpack.c.h.b16 %v844
      %v890 = vpack.c.b16 %v888, %v886
      %v891 = vpack.c.b16 %v889, %v887
      %v926 = vunpack.c.l.b16 %v845
      %v927 = vunpack.c.l.b16 %v846
      %v928 = vunpack.c.l.b16 %v847
      %v929 = vunpack.c.l.b16 %v848
      %v930 = vunpack.c.l.b16 %v849
      %v931 = vunpack.c.l.b16 %v850
      %v932 = vunpack.c.l.b16 %v851
      %v933 = vunpack.c.l.b16 %v852
      %v934 = vunpack.c.l.b16 %v853
      %v935 = vunpack.c.l.b16 %v854
      %v936 = vunpack.c.l.b16 %v855
      %v937 = vunpack.c.l.b16 %v856
      %v938 = vunpack.c.l.b16 %v857
      %v939 = vunpack.c.l.b16 %v858
      %v940 = vunpack.c.l.b16 %v859
      %v941 = vunpack.c.l.b16 %v860
      %v942 = vunpack.c.l.b16 %v861
      %v943 = vunpack.c.l.b16 %v862
      %v944 = vunpack.c.l.b16 %v863
      %v945 = vunpack.c.l.b16 %v864
      %v946 = vunpack.c.l.b16 %v865
      %v947 = vunpack.c.l.b16 %v866
      %v948 = vunpack.c.l.b16 %v867
      %v949 = vunpack.c.l.b16 %v868
      %v950 = vunpack.c.l.b16 %v869
      %v951 = vunpack.c.l.b16 %v870
      %v952 = vunpack.c.l.b16 %v871
      %v953 = vunpack.c.l.b16 %v872
      %v954 = vunpack.c.l.b16 %v873
      %v955 = vunpack.c.l.b16 %v874
      %v956 = vunpack.c.l.b16 %v875
      %v957 = vunpack.c.l.b16 %v876
      %v958 = vpack.c.b16 %v927, %v926
      %v959 = vpack.c.b16 %v929, %v928
      %v960 = vpack.c.b16 %v931, %v930
      %v961 = vpack.c.b16 %v933, %v932
      %v962 = vpack.c.b16 %v935, %v934
      %v963 = vpack.c.b16 %v937, %v936
      %v964 = vpack.c.b16 %v939, %v938
      %v965 = vpack.c.b16 %v941, %v940
      %v966 = vpack.c.b16 %v943, %v942
      %v967 = vpack.c.b16 %v945, %v944
      %v968 = vpack.c.b16 %v947, %v946
      %v969 = vpack.c.b16 %v949, %v948
      %v970 = vpack.c.b16 %v951, %v950
      %v971 = vpack.c.b16 %v953, %v952
      %v972 = vpack.c.b16 %v955, %v954
      %v973 = vpack.c.b16 %v957, %v956
      %990 = vmatprep.subr.bf16.mxu0 0
      %991 = vmatpush1.bf16.msra.mxu0 %v965
      %992 = vmatprep.subr.bf16.mxu0 0
      %993 = vmatpush1.bf16.msra.mxu0 %v964
      %994 = vmatprep.subr.bf16.mxu0 0
      %995 = vmatpush1.bf16.msra.mxu0 %v963
      %996 = vmatprep.subr.bf16.mxu0 0
      %997 = vmatpush1.bf16.msra.mxu0 %v962
      %998 = vmatprep.subr.bf16.mxu0 0
      %999 = vmatpush1.bf16.msra.mxu0 %v961
      %1000 = vmatprep.subr.bf16.mxu0 0
      %1001 = vmatpush1.bf16.msra.mxu0 %v960
      %1002 = vmatprep.subr.bf16.mxu0 0
      %1003 = vmatpush1.bf16.msra.mxu0 %v959
      %1004 = vmatprep.subr.bf16.mxu0 0
      %1005 = vmatpush1.bf16.msra.mxu0 %v958
      %1006 = vmatprep.subr.bf16.mxu0 0
      %1007 = vmatpush2.bf16.msra.mxu0 %v973
      %1008 = vmatprep.subr.bf16.mxu0 0
      %1009 = vmatpush2.bf16.msra.mxu0 %v972
      %1010 = vmatprep.subr.bf16.mxu0 0
      %1011 = vmatpush2.bf16.msra.mxu0 %v971
      %1012 = vmatprep.subr.bf16.mxu0 0
      %1013 = vmatpush2.bf16.msra.mxu0 %v970
      %1014 = vmatprep.subr.bf16.mxu0 0
      %1015 = vmatpush2.bf16.msra.mxu0 %v969
      %1016 = vmatprep.subr.bf16.mxu0 0
      %1017 = vmatpush2.bf16.msra.mxu0 %v968
      %1018 = vmatprep.subr.bf16.mxu0 0
      %1019 = vmatpush2.bf16.msra.mxu0 %v967
      %1020 = vmatprep.subr.bf16.mxu0 0
      %1021 = vmatpush2.bf16.msra.mxu0 %v966
      %1022 = vmatprep.mubr.bf16.mxu0 %v891
      %1023 = vmatmul.mubr.bf16.gmra.mxu0 %v890
      %v1024 = vpop.f32.mrf.mxu0
      %v1025 = vadd.f32 %v882, %v1024
      %v1026 = vpop.f32.mrf.mxu0
      %v1027 = vpop.f32.mrf.mxu0
      %v1028 = vadd.f32 %v882, %v1027
      %v1029 = vpop.f32.mrf.mxu0
      %1030 = vdwg.mxu0
      %v1031 = vmax.f32 %v1025, 0.0
      %v1032 = vmax.f32 %v1028, 0.0
      %v1033 = vld [vmem:[#allocation2 + $0x8] sm:$0xff]
      %v1034 = vld [vmem:[#allocation2 + $0x10] sm:$0xff]
      %v1035 = vpack.c.bf16 %v1034, %v1033
      %v1036 = vld [vmem:[%s5] sm:$0xf]
      %v1037 = vld [vmem:[%s5 + $0x4] sm:$0xf]
      %v1038 = vld [vmem:[%s5 + $0x8] sm:$0xf]
      %v1039 = vld [vmem:[%s5 + $0xc] sm:$0xf]
      %v1040 = vld [vmem:[%s5 + $0x10] sm:$0xf]
      %v1041 = vld [vmem:[%s5 + $0x14] sm:$0xf]
      %v1042 = vld [vmem:[%s5 + $0x18] sm:$0xf]
      %v1043 = vld [vmem:[%s5 + $0x1c] sm:$0xf]
      %v1044 = vld [vmem:[%s5 + $0x20] sm:$0xf]
      %v1045 = vld [vmem:[%s5 + $0x24] sm:$0xf]
      %v1046 = vld [vmem:[%s5 + $0x28] sm:$0xf]
      %v1047 = vld [vmem:[%s5 + $0x2c] sm:$0xf]
      %v1048 = vld [vmem:[%s5 + $0x30] sm:$0xf]
      %v1049 = vld [vmem:[%s5 + $0x34] sm:$0xf]
      %v1050 = vld [vmem:[%s5 + $0x38] sm:$0xf]
      %v1051 = vld [vmem:[%s5 + $0x3c] sm:$0xf]
      %v1052 = vld [vmem:[%s6] sm:$0x1]
      %v1054 = vlaneseq
      %v1055 = vshrl.u32 %v1054, 7
      %v1056 = vsub.s32 0, %v1055
      %v1057 = vrot.slane %v1052, %v1056
      %v1075 = vunpack.c.l.b16 %v1036
      %v1076 = vunpack.c.l.b16 %v1037
      %v1077 = vunpack.c.l.b16 %v1038
      %v1078 = vunpack.c.l.b16 %v1039
      %v1079 = vunpack.c.l.b16 %v1040
      %v1080 = vunpack.c.l.b16 %v1041
      %v1081 = vunpack.c.l.b16 %v1042
      %v1082 = vunpack.c.l.b16 %v1043
      %v1083 = vunpack.c.l.b16 %v1044
      %v1084 = vunpack.c.l.b16 %v1045
      %v1085 = vunpack.c.l.b16 %v1046
      %v1086 = vunpack.c.l.b16 %v1047
      %v1087 = vunpack.c.l.b16 %v1048
      %v1088 = vunpack.c.l.b16 %v1049
      %v1089 = vunpack.c.l.b16 %v1050
      %v1090 = vunpack.c.l.b16 %v1051
      %v1091 = vpack.c.b16 %v1076, %v1075
      %v1092 = vpack.c.b16 %v1078, %v1077
      %v1093 = vpack.c.b16 %v1080, %v1079
      %v1094 = vpack.c.b16 %v1082, %v1081
      %v1095 = vpack.c.b16 %v1084, %v1083
      %v1096 = vpack.c.b16 %v1086, %v1085
      %v1097 = vpack.c.b16 %v1088, %v1087
      %v1098 = vpack.c.b16 %v1090, %v1089
      %1107 = vmatprep.subr.bf16.mxu0 0
      %1108 = vmatpush1.bf16.msra.mxu0 %v1098
      %1109 = vmatprep.subr.bf16.mxu0 0
      %1110 = vmatpush1.bf16.msra.mxu0 %v1097
      %1111 = vmatprep.subr.bf16.mxu0 0
      %1112 = vmatpush1.bf16.msra.mxu0 %v1096
      %1113 = vmatprep.subr.bf16.mxu0 0
      %1114 = vmatpush1.bf16.msra.mxu0 %v1095
      %1115 = vmatprep.subr.bf16.mxu0 0
      %1116 = vmatpush1.bf16.msra.mxu0 %v1094
      %1117 = vmatprep.subr.bf16.mxu0 0
      %1118 = vmatpush1.bf16.msra.mxu0 %v1093
      %1119 = vmatprep.subr.bf16.mxu0 0
      %1120 = vmatpush1.bf16.msra.mxu0 %v1092
      %1121 = vmatprep.subr.bf16.mxu0 0
      %1122 = vmatpush1.bf16.msra.mxu0 %v1091
      %1123 = vmatprep.subr.bf16.mxu0 0
      %1124 = vmatpush2.bf16.msra.mxu0 0
      %1125 = vmatprep.subr.bf16.mxu0 0
      %1126 = vmatpush2.bf16.msra.mxu0 0
      %1127 = vmatprep.subr.bf16.mxu0 0
      %1128 = vmatpush2.bf16.msra.mxu0 0
      %1129 = vmatprep.subr.bf16.mxu0 0
      %1130 = vmatpush2.bf16.msra.mxu0 0
      %1131 = vmatprep.subr.bf16.mxu0 0
      %1132 = vmatpush2.bf16.msra.mxu0 0
      %1133 = vmatprep.subr.bf16.mxu0 0
      %1134 = vmatpush2.bf16.msra.mxu0 0
      %1135 = vmatprep.subr.bf16.mxu0 0
      %1136 = vmatpush2.bf16.msra.mxu0 0
      %1137 = vmatprep.subr.bf16.mxu0 0
      %1138 = vmatpush2.bf16.msra.mxu0 0
      %1139 = vmatprep.mubr.bf16.mxu0 0
      %1140 = vmatmul.mubr.bf16.gmra.mxu0 %v1035
      %v1141 = vpop.f32.mrf.mxu0
      %v1142 = vadd.f32 %v1057, %v1141
      %v1143 = vpop.f32.mrf.mxu0
      %v1144 = vpop.f32.mrf.mxu0
      %v1145 = vadd.f32 %v1057, %v1144
      %v1146 = vpop.f32.mrf.mxu0
      %1147 = vdwg.mxu0
      %v1148 = vadd.f32 %v1031, %v1142
      %v1149 = vadd.f32 %v1032, %v1145
      %v1150 = vmax.f32 %v1148, 0.0
      %v1151 = vmax.f32 %v1149, 0.0
      %v1152 = vld [vmem:[#allocation2 + $0x17] sm:$0x1]
      %1153 = vst [vmem:[#allocation2 + $0x7] sm:$0x1] %v1152
      %v1154 = vld [vmem:[#allocation3 + $0x17] sm:$0x1]
      %1155 = vst [vmem:[#allocation3 + $0x7] sm:$0x1] %v1154
      %1156 = vst [vmem:[#allocation4 + $0x8] sm:$0xff] %v1150
      %1157 = vst [vmem:[#allocation4 + $0x10] sm:$0xff] %v1151
      %v1158 = vld [vmem:[#allocation4 + $0x6] sm:$0xff]
      %v1159 = vld [vmem:[#allocation4 + $0xe] sm:$0xff]
      %v1160 = vpack.c.bf16 %v1159, %v1158
      %v1162 = vunpack.c.l.b16 %v1160
      %v1163 = vunpack.c.h.b16 %v1160
      %v1164 = vpack.c.b16 %v1162, %v1162
      %v1165 = vpack.c.b16 %v1163, %v1163
      %1168 = vst [vmem:[#allocation8] sm:$0xf] %v1164
      %1169 = vst [vmem:[#allocation8 + $0x8] sm:$0xf] %v1165
      %v1170 = vld [vmem:[#allocation4 + $0x8] sm:$0xff]
      %v1171 = vld [vmem:[#allocation4 + $0x10] sm:$0xff]
      %v1172 = vpack.c.bf16 %v1171, %v1170
      %v1174 = vunpack.c.l.b16 %v1172
      %v1175 = vunpack.c.h.b16 %v1172
      %v1176 = vpack.c.b16 %v1174, %v1174
      %v1177 = vpack.c.b16 %v1175, %v1175
      %1180 = vst [vmem:[#allocation8 + $0x4] sm:$0xf] %v1176
      %1181 = vst [vmem:[#allocation8 + $0xc] sm:$0xf] %v1177
      %v1182 = vld [vmem:[#allocation8] sm:$0xff]
      %v1183 = vld [vmem:[#allocation8 + $0x8] sm:$0xff]
      %v1184 = vld [vmem:[%s7] sm:$0xf]
      %v1185 = vld [vmem:[%s7 + $0x4] sm:$0xf]
      %v1186 = vld [vmem:[%s7 + $0x8] sm:$0xf]
      %v1187 = vld [vmem:[%s7 + $0xc] sm:$0xf]
      %v1188 = vld [vmem:[%s7 + $0x10] sm:$0xf]
      %v1189 = vld [vmem:[%s7 + $0x14] sm:$0xf]
      %v1190 = vld [vmem:[%s7 + $0x18] sm:$0xf]
      %v1191 = vld [vmem:[%s7 + $0x1c] sm:$0xf]
      %v1192 = vld [vmem:[%s7 + $0x20] sm:$0xf]
      %v1193 = vld [vmem:[%s7 + $0x24] sm:$0xf]
      %v1194 = vld [vmem:[%s7 + $0x28] sm:$0xf]
      %v1195 = vld [vmem:[%s7 + $0x2c] sm:$0xf]
      %v1196 = vld [vmem:[%s7 + $0x30] sm:$0xf]
      %v1197 = vld [vmem:[%s7 + $0x34] sm:$0xf]
      %v1198 = vld [vmem:[%s7 + $0x38] sm:$0xf]
      %v1199 = vld [vmem:[%s7 + $0x3c] sm:$0xf]
      %v1200 = vld [vmem:[%s7 + $0x40] sm:$0xf]
      %v1201 = vld [vmem:[%s7 + $0x44] sm:$0xf]
      %v1202 = vld [vmem:[%s7 + $0x48] sm:$0xf]
      %v1203 = vld [vmem:[%s7 + $0x4c] sm:$0xf]
      %v1204 = vld [vmem:[%s7 + $0x50] sm:$0xf]
      %v1205 = vld [vmem:[%s7 + $0x54] sm:$0xf]
      %v1206 = vld [vmem:[%s7 + $0x58] sm:$0xf]
      %v1207 = vld [vmem:[%s7 + $0x5c] sm:$0xf]
      %v1208 = vld [vmem:[%s7 + $0x60] sm:$0xf]
      %v1209 = vld [vmem:[%s7 + $0x64] sm:$0xf]
      %v1210 = vld [vmem:[%s7 + $0x68] sm:$0xf]
      %v1211 = vld [vmem:[%s7 + $0x6c] sm:$0xf]
      %v1212 = vld [vmem:[%s7 + $0x70] sm:$0xf]
      %v1213 = vld [vmem:[%s7 + $0x74] sm:$0xf]
      %v1214 = vld [vmem:[%s7 + $0x78] sm:$0xf]
      %v1215 = vld [vmem:[%s7 + $0x7c] sm:$0xf]
      %v1216 = vld [vmem:[%s8] sm:$0x1]
      %v1218 = vlaneseq
      %v1219 = vshrl.u32 %v1218, 7
      %v1220 = vsub.s32 0, %v1219
      %v1221 = vrot.slane %v1216, %v1220
      %v1225 = vunpack.c.l.b16 %v1182
      %v1226 = vunpack.c.h.b16 %v1182
      %v1227 = vunpack.c.l.b16 %v1183
      %v1228 = vunpack.c.h.b16 %v1183
      %v1229 = vpack.c.b16 %v1227, %v1225
      %v1230 = vpack.c.b16 %v1228, %v1226
      %v1265 = vunpack.c.l.b16 %v1184
      %v1266 = vunpack.c.l.b16 %v1185
      %v1267 = vunpack.c.l.b16 %v1186
      %v1268 = vunpack.c.l.b16 %v1187
      %v1269 = vunpack.c.l.b16 %v1188
      %v1270 = vunpack.c.l.b16 %v1189
      %v1271 = vunpack.c.l.b16 %v1190
      %v1272 = vunpack.c.l.b16 %v1191
      %v1273 = vunpack.c.l.b16 %v1192
      %v1274 = vunpack.c.l.b16 %v1193
      %v1275 = vunpack.c.l.b16 %v1194
      %v1276 = vunpack.c.l.b16 %v1195
      %v1277 = vunpack.c.l.b16 %v1196
      %v1278 = vunpack.c.l.b16 %v1197
      %v1279 = vunpack.c.l.b16 %v1198
      %v1280 = vunpack.c.l.b16 %v1199
      %v1281 = vunpack.c.l.b16 %v1200
      %v1282 = vunpack.c.l.b16 %v1201
      %v1283 = vunpack.c.l.b16 %v1202
      %v1284 = vunpack.c.l.b16 %v1203
      %v1285 = vunpack.c.l.b16 %v1204
      %v1286 = vunpack.c.l.b16 %v1205
      %v1287 = vunpack.c.l.b16 %v1206
      %v1288 = vunpack.c.l.b16 %v1207
      %v1289 = vunpack.c.l.b16 %v1208
      %v1290 = vunpack.c.l.b16 %v1209
      %v1291 = vunpack.c.l.b16 %v1210
      %v1292 = vunpack.c.l.b16 %v1211
      %v1293 = vunpack.c.l.b16 %v1212
      %v1294 = vunpack.c.l.b16 %v1213
      %v1295 = vunpack.c.l.b16 %v1214
      %v1296 = vunpack.c.l.b16 %v1215
      %v1297 = vpack.c.b16 %v1266, %v1265
      %v1298 = vpack.c.b16 %v1268, %v1267
      %v1299 = vpack.c.b16 %v1270, %v1269
      %v1300 = vpack.c.b16 %v1272, %v1271
      %v1301 = vpack.c.b16 %v1274, %v1273
      %v1302 = vpack.c.b16 %v1276, %v1275
      %v1303 = vpack.c.b16 %v1278, %v1277
      %v1304 = vpack.c.b16 %v1280, %v1279
      %v1305 = vpack.c.b16 %v1282, %v1281
      %v1306 = vpack.c.b16 %v1284, %v1283
      %v1307 = vpack.c.b16 %v1286, %v1285
      %v1308 = vpack.c.b16 %v1288, %v1287
      %v1309 = vpack.c.b16 %v1290, %v1289
      %v1310 = vpack.c.b16 %v1292, %v1291
      %v1311 = vpack.c.b16 %v1294, %v1293
      %v1312 = vpack.c.b16 %v1296, %v1295
      %1329 = vmatprep.subr.bf16.mxu0 0
      %1330 = vmatpush1.bf16.msra.mxu0 %v1304
      %1331 = vmatprep.subr.bf16.mxu0 0
      %1332 = vmatpush1.bf16.msra.mxu0 %v1303
      %1333 = vmatprep.subr.bf16.mxu0 0
      %1334 = vmatpush1.bf16.msra.mxu0 %v1302
      %1335 = vmatprep.subr.bf16.mxu0 0
      %1336 = vmatpush1.bf16.msra.mxu0 %v1301
      %1337 = vmatprep.subr.bf16.mxu0 0
      %1338 = vmatpush1.bf16.msra.mxu0 %v1300
      %1339 = vmatprep.subr.bf16.mxu0 0
      %1340 = vmatpush1.bf16.msra.mxu0 %v1299
      %1341 = vmatprep.subr.bf16.mxu0 0
      %1342 = vmatpush1.bf16.msra.mxu0 %v1298
      %1343 = vmatprep.subr.bf16.mxu0 0
      %1344 = vmatpush1.bf16.msra.mxu0 %v1297
      %1345 = vmatprep.subr.bf16.mxu0 0
      %1346 = vmatpush2.bf16.msra.mxu0 %v1312
      %1347 = vmatprep.subr.bf16.mxu0 0
      %1348 = vmatpush2.bf16.msra.mxu0 %v1311
      %1349 = vmatprep.subr.bf16.mxu0 0
      %1350 = vmatpush2.bf16.msra.mxu0 %v1310
      %1351 = vmatprep.subr.bf16.mxu0 0
      %1352 = vmatpush2.bf16.msra.mxu0 %v1309
      %1353 = vmatprep.subr.bf16.mxu0 0
      %1354 = vmatpush2.bf16.msra.mxu0 %v1308
      %1355 = vmatprep.subr.bf16.mxu0 0
      %1356 = vmatpush2.bf16.msra.mxu0 %v1307
      %1357 = vmatprep.subr.bf16.mxu0 0
      %1358 = vmatpush2.bf16.msra.mxu0 %v1306
      %1359 = vmatprep.subr.bf16.mxu0 0
      %1360 = vmatpush2.bf16.msra.mxu0 %v1305
      %1361 = vmatprep.mubr.bf16.mxu0 %v1230
      %1362 = vmatmul.mubr.bf16.gmra.mxu0 %v1229
      %v1363 = vpop.f32.mrf.mxu0
      %v1364 = vadd.f32 %v1221, %v1363
      %v1365 = vpop.f32.mrf.mxu0
      %v1366 = vpop.f32.mrf.mxu0
      %v1367 = vadd.f32 %v1221, %v1366
      %v1368 = vpop.f32.mrf.mxu0
      %1369 = vdwg.mxu0
      %v1370 = vmax.f32 %v1364, 0.0
      %v1371 = vmax.f32 %v1367, 0.0
      %1372 = vst [vmem:[#allocation5 + $0x8] sm:$0xff] %v1370
      %1373 = vst [vmem:[#allocation5 + $0x10] sm:$0xff] %v1371
      %v1374 = vld [vmem:[#allocation5 + $0x6] sm:$0xff]
      %v1375 = vld [vmem:[#allocation5 + $0xe] sm:$0xff]
      %v1376 = vpack.c.bf16 %v1375, %v1374
      %v1378 = vunpack.c.l.b16 %v1376
      %v1379 = vunpack.c.h.b16 %v1376
      %v1380 = vpack.c.b16 %v1378, %v1378
      %v1381 = vpack.c.b16 %v1379, %v1379
      %1384 = vst [vmem:[#allocation8] sm:$0xf] %v1380
      %1385 = vst [vmem:[#allocation8 + $0x8] sm:$0xf] %v1381
      %v1386 = vld [vmem:[#allocation5 + $0x8] sm:$0xff]
      %v1387 = vld [vmem:[#allocation5 + $0x10] sm:$0xff]
      %v1388 = vpack.c.bf16 %v1387, %v1386
      %v1390 = vunpack.c.l.b16 %v1388
      %v1391 = vunpack.c.h.b16 %v1388
      %v1392 = vpack.c.b16 %v1390, %v1390
      %v1393 = vpack.c.b16 %v1391, %v1391
      %1396 = vst [vmem:[#allocation8 + $0x4] sm:$0xf] %v1392
      %1397 = vst [vmem:[#allocation8 + $0xc] sm:$0xf] %v1393
      %v1398 = vld [vmem:[#allocation8] sm:$0xff]
      %v1399 = vld [vmem:[#allocation8 + $0x8] sm:$0xff]
      %v1400 = vld [vmem:[%s9] sm:$0xf]
      %v1401 = vld [vmem:[%s9 + $0x4] sm:$0xf]
      %v1402 = vld [vmem:[%s9 + $0x8] sm:$0xf]
      %v1403 = vld [vmem:[%s9 + $0xc] sm:$0xf]
      %v1404 = vld [vmem:[%s9 + $0x10] sm:$0xf]
      %v1405 = vld [vmem:[%s9 + $0x14] sm:$0xf]
      %v1406 = vld [vmem:[%s9 + $0x18] sm:$0xf]
      %v1407 = vld [vmem:[%s9 + $0x1c] sm:$0xf]
      %v1408 = vld [vmem:[%s9 + $0x20] sm:$0xf]
      %v1409 = vld [vmem:[%s9 + $0x24] sm:$0xf]
      %v1410 = vld [vmem:[%s9 + $0x28] sm:$0xf]
      %v1411 = vld [vmem:[%s9 + $0x2c] sm:$0xf]
      %v1412 = vld [vmem:[%s9 + $0x30] sm:$0xf]
      %v1413 = vld [vmem:[%s9 + $0x34] sm:$0xf]
      %v1414 = vld [vmem:[%s9 + $0x38] sm:$0xf]
      %v1415 = vld [vmem:[%s9 + $0x3c] sm:$0xf]
      %v1416 = vld [vmem:[%s9 + $0x40] sm:$0xf]
      %v1417 = vld [vmem:[%s9 + $0x44] sm:$0xf]
      %v1418 = vld [vmem:[%s9 + $0x48] sm:$0xf]
      %v1419 = vld [vmem:[%s9 + $0x4c] sm:$0xf]
      %v1420 = vld [vmem:[%s9 + $0x50] sm:$0xf]
      %v1421 = vld [vmem:[%s9 + $0x54] sm:$0xf]
      %v1422 = vld [vmem:[%s9 + $0x58] sm:$0xf]
      %v1423 = vld [vmem:[%s9 + $0x5c] sm:$0xf]
      %v1424 = vld [vmem:[%s9 + $0x60] sm:$0xf]
      %v1425 = vld [vmem:[%s9 + $0x64] sm:$0xf]
      %v1426 = vld [vmem:[%s9 + $0x68] sm:$0xf]
      %v1427 = vld [vmem:[%s9 + $0x6c] sm:$0xf]
      %v1428 = vld [vmem:[%s9 + $0x70] sm:$0xf]
      %v1429 = vld [vmem:[%s9 + $0x74] sm:$0xf]
      %v1430 = vld [vmem:[%s9 + $0x78] sm:$0xf]
      %v1431 = vld [vmem:[%s9 + $0x7c] sm:$0xf]
      %v1432 = vld [vmem:[%s10] sm:$0x1]
      %v1434 = vlaneseq
      %v1435 = vshrl.u32 %v1434, 7
      %v1436 = vsub.s32 0, %v1435
      %v1437 = vrot.slane %v1432, %v1436
      %v1441 = vunpack.c.l.b16 %v1398
      %v1442 = vunpack.c.h.b16 %v1398
      %v1443 = vunpack.c.l.b16 %v1399
      %v1444 = vunpack.c.h.b16 %v1399
      %v1445 = vpack.c.b16 %v1443, %v1441
      %v1446 = vpack.c.b16 %v1444, %v1442
      %v1481 = vunpack.c.l.b16 %v1400
      %v1482 = vunpack.c.l.b16 %v1401
      %v1483 = vunpack.c.l.b16 %v1402
      %v1484 = vunpack.c.l.b16 %v1403
      %v1485 = vunpack.c.l.b16 %v1404
      %v1486 = vunpack.c.l.b16 %v1405
      %v1487 = vunpack.c.l.b16 %v1406
      %v1488 = vunpack.c.l.b16 %v1407
      %v1489 = vunpack.c.l.b16 %v1408
      %v1490 = vunpack.c.l.b16 %v1409
      %v1491 = vunpack.c.l.b16 %v1410
      %v1492 = vunpack.c.l.b16 %v1411
      %v1493 = vunpack.c.l.b16 %v1412
      %v1494 = vunpack.c.l.b16 %v1413
      %v1495 = vunpack.c.l.b16 %v1414
      %v1496 = vunpack.c.l.b16 %v1415
      %v1497 = vunpack.c.l.b16 %v1416
      %v1498 = vunpack.c.l.b16 %v1417
      %v1499 = vunpack.c.l.b16 %v1418
      %v1500 = vunpack.c.l.b16 %v1419
      %v1501 = vunpack.c.l.b16 %v1420
      %v1502 = vunpack.c.l.b16 %v1421
      %v1503 = vunpack.c.l.b16 %v1422
      %v1504 = vunpack.c.l.b16 %v1423
      %v1505 = vunpack.c.l.b16 %v1424
      %v1506 = vunpack.c.l.b16 %v1425
      %v1507 = vunpack.c.l.b16 %v1426
      %v1508 = vunpack.c.l.b16 %v1427
      %v1509 = vunpack.c.l.b16 %v1428
      %v1510 = vunpack.c.l.b16 %v1429
      %v1511 = vunpack.c.l.b16 %v1430
      %v1512 = vunpack.c.l.b16 %v1431
      %v1513 = vpack.c.b16 %v1482, %v1481
      %v1514 = vpack.c.b16 %v1484, %v1483
      %v1515 = vpack.c.b16 %v1486, %v1485
      %v1516 = vpack.c.b16 %v1488, %v1487
      %v1517 = vpack.c.b16 %v1490, %v1489
      %v1518 = vpack.c.b16 %v1492, %v1491
      %v1519 = vpack.c.b16 %v1494, %v1493
      %v1520 = vpack.c.b16 %v1496, %v1495
      %v1521 = vpack.c.b16 %v1498, %v1497
      %v1522 = vpack.c.b16 %v1500, %v1499
      %v1523 = vpack.c.b16 %v1502, %v1501
      %v1524 = vpack.c.b16 %v1504, %v1503
      %v1525 = vpack.c.b16 %v1506, %v1505
      %v1526 = vpack.c.b16 %v1508, %v1507
      %v1527 = vpack.c.b16 %v1510, %v1509
      %v1528 = vpack.c.b16 %v1512, %v1511
      %1545 = vmatprep.subr.bf16.mxu0 0
      %1546 = vmatpush1.bf16.msra.mxu0 %v1520
      %1547 = vmatprep.subr.bf16.mxu0 0
      %1548 = vmatpush1.bf16.msra.mxu0 %v1519
      %1549 = vmatprep.subr.bf16.mxu0 0
      %1550 = vmatpush1.bf16.msra.mxu0 %v1518
      %1551 = vmatprep.subr.bf16.mxu0 0
      %1552 = vmatpush1.bf16.msra.mxu0 %v1517
      %1553 = vmatprep.subr.bf16.mxu0 0
      %1554 = vmatpush1.bf16.msra.mxu0 %v1516
      %1555 = vmatprep.subr.bf16.mxu0 0
      %1556 = vmatpush1.bf16.msra.mxu0 %v1515
      %1557 = vmatprep.subr.bf16.mxu0 0
      %1558 = vmatpush1.bf16.msra.mxu0 %v1514
      %1559 = vmatprep.subr.bf16.mxu0 0
      %1560 = vmatpush1.bf16.msra.mxu0 %v1513
      %1561 = vmatprep.subr.bf16.mxu0 0
      %1562 = vmatpush2.bf16.msra.mxu0 %v1528
      %1563 = vmatprep.subr.bf16.mxu0 0
      %1564 = vmatpush2.bf16.msra.mxu0 %v1527
      %1565 = vmatprep.subr.bf16.mxu0 0
      %1566 = vmatpush2.bf16.msra.mxu0 %v1526
      %1567 = vmatprep.subr.bf16.mxu0 0
      %1568 = vmatpush2.bf16.msra.mxu0 %v1525
      %1569 = vmatprep.subr.bf16.mxu0 0
      %1570 = vmatpush2.bf16.msra.mxu0 %v1524
      %1571 = vmatprep.subr.bf16.mxu0 0
      %1572 = vmatpush2.bf16.msra.mxu0 %v1523
      %1573 = vmatprep.subr.bf16.mxu0 0
      %1574 = vmatpush2.bf16.msra.mxu0 %v1522
      %1575 = vmatprep.subr.bf16.mxu0 0
      %1576 = vmatpush2.bf16.msra.mxu0 %v1521
      %1577 = vmatprep.mubr.bf16.mxu0 %v1446
      %1578 = vmatmul.mubr.bf16.gmra.mxu0 %v1445
      %v1579 = vpop.f32.mrf.mxu0
      %v1580 = vadd.f32 %v1437, %v1579
      %v1581 = vpop.f32.mrf.mxu0
      %v1582 = vpop.f32.mrf.mxu0
      %v1583 = vadd.f32 %v1437, %v1582
      %v1584 = vpop.f32.mrf.mxu0
      %1585 = vdwg.mxu0
      %v1586 = vmax.f32 %v1580, 0.0
      %v1587 = vmax.f32 %v1583, 0.0
      %v1588 = vld [vmem:[#allocation4 + $0x8] sm:$0xff]
      %v1589 = vld [vmem:[#allocation4 + $0x10] sm:$0xff]
      %v1590 = vadd.f32 %v1586, %v1588
      %v1591 = vadd.f32 %v1587, %v1589
      %v1592 = vmax.f32 %v1590, 0.0
      %v1593 = vmax.f32 %v1591, 0.0
      %v1594 = vld [vmem:[#allocation4 + $0x16] sm:$0x3]
      %1595 = vst [vmem:[#allocation4 + $0x6] sm:$0x3] %v1594
      %v1596 = vld [vmem:[#allocation5 + $0x16] sm:$0x3]
      %1597 = vst [vmem:[#allocation5 + $0x6] sm:$0x3] %v1596
      %1598 = vst [vmem:[#allocation6 + $0x8] sm:$0xff] %v1592
      %1599 = vst [vmem:[#allocation6 + $0x10] sm:$0xff] %v1593
      %v1600 = vld [vmem:[#allocation6 + $0x4] sm:$0xff]
      %v1601 = vld [vmem:[#allocation6 + $0xc] sm:$0xff]
      %v1602 = vpack.c.bf16 %v1601, %v1600
      %v1604 = vunpack.c.l.b16 %v1602
      %v1605 = vunpack.c.h.b16 %v1602
      %v1606 = vpack.c.b16 %v1604, %v1604
      %v1607 = vpack.c.b16 %v1605, %v1605
      %1610 = vst [vmem:[#allocation8] sm:$0xf] %v1606
      %1611 = vst [vmem:[#allocation8 + $0x8] sm:$0xf] %v1607
      %v1612 = vld [vmem:[#allocation6 + $0x8] sm:$0xff]
      %v1613 = vld [vmem:[#allocation6 + $0x10] sm:$0xff]
      %v1614 = vpack.c.bf16 %v1613, %v1612
      %v1616 = vunpack.c.l.b16 %v1614
      %v1617 = vunpack.c.h.b16 %v1614
      %v1618 = vpack.c.b16 %v1616, %v1616
      %v1619 = vpack.c.b16 %v1617, %v1617
      %1622 = vst [vmem:[#allocation8 + $0x4] sm:$0xf] %v1618
      %1623 = vst [vmem:[#allocation8 + $0xc] sm:$0xf] %v1619
      %v1624 = vld [vmem:[#allocation8] sm:$0xff]
      %v1625 = vld [vmem:[#allocation8 + $0x8] sm:$0xff]
      %v1626 = vld [vmem:[%s11] sm:$0xf]
      %v1627 = vld [vmem:[%s11 + $0x4] sm:$0xf]
      %v1628 = vld [vmem:[%s11 + $0x8] sm:$0xf]
      %v1629 = vld [vmem:[%s11 + $0xc] sm:$0xf]
      %v1630 = vld [vmem:[%s11 + $0x10] sm:$0xf]
      %v1631 = vld [vmem:[%s11 + $0x14] sm:$0xf]
      %v1632 = vld [vmem:[%s11 + $0x18] sm:$0xf]
      %v1633 = vld [vmem:[%s11 + $0x1c] sm:$0xf]
      %v1634 = vld [vmem:[%s11 + $0x20] sm:$0xf]
      %v1635 = vld [vmem:[%s11 + $0x24] sm:$0xf]
      %v1636 = vld [vmem:[%s11 + $0x28] sm:$0xf]
      %v1637 = vld [vmem:[%s11 + $0x2c] sm:$0xf]
      %v1638 = vld [vmem:[%s11 + $0x30] sm:$0xf]
      %v1639 = vld [vmem:[%s11 + $0x34] sm:$0xf]
      %v1640 = vld [vmem:[%s11 + $0x38] sm:$0xf]
      %v1641 = vld [vmem:[%s11 + $0x3c] sm:$0xf]
      %v1642 = vld [vmem:[%s11 + $0x40] sm:$0xf]
      %v1643 = vld [vmem:[%s11 + $0x44] sm:$0xf]
      %v1644 = vld [vmem:[%s11 + $0x48] sm:$0xf]
      %v1645 = vld [vmem:[%s11 + $0x4c] sm:$0xf]
      %v1646 = vld [vmem:[%s11 + $0x50] sm:$0xf]
      %v1647 = vld [vmem:[%s11 + $0x54] sm:$0xf]
      %v1648 = vld [vmem:[%s11 + $0x58] sm:$0xf]
      %v1649 = vld [vmem:[%s11 + $0x5c] sm:$0xf]
      %v1650 = vld [vmem:[%s11 + $0x60] sm:$0xf]
      %v1651 = vld [vmem:[%s11 + $0x64] sm:$0xf]
      %v1652 = vld [vmem:[%s11 + $0x68] sm:$0xf]
      %v1653 = vld [vmem:[%s11 + $0x6c] sm:$0xf]
      %v1654 = vld [vmem:[%s11 + $0x70] sm:$0xf]
      %v1655 = vld [vmem:[%s11 + $0x74] sm:$0xf]
      %v1656 = vld [vmem:[%s11 + $0x78] sm:$0xf]
      %v1657 = vld [vmem:[%s11 + $0x7c] sm:$0xf]
      %v1658 = vld [vmem:[%s12] sm:$0x1]
      %v1660 = vlaneseq
      %v1661 = vshrl.u32 %v1660, 7
      %v1662 = vsub.s32 0, %v1661
      %v1663 = vrot.slane %v1658, %v1662
      %v1667 = vunpack.c.l.b16 %v1624
      %v1668 = vunpack.c.h.b16 %v1624
      %v1669 = vunpack.c.l.b16 %v1625
      %v1670 = vunpack.c.h.b16 %v1625
      %v1671 = vpack.c.b16 %v1669, %v1667
      %v1672 = vpack.c.b16 %v1670, %v1668
      %v1707 = vunpack.c.l.b16 %v1626
      %v1708 = vunpack.c.l.b16 %v1627
      %v1709 = vunpack.c.l.b16 %v1628
      %v1710 = vunpack.c.l.b16 %v1629
      %v1711 = vunpack.c.l.b16 %v1630
      %v1712 = vunpack.c.l.b16 %v1631
      %v1713 = vunpack.c.l.b16 %v1632
      %v1714 = vunpack.c.l.b16 %v1633
      %v1715 = vunpack.c.l.b16 %v1634
      %v1716 = vunpack.c.l.b16 %v1635
      %v1717 = vunpack.c.l.b16 %v1636
      %v1718 = vunpack.c.l.b16 %v1637
      %v1719 = vunpack.c.l.b16 %v1638
      %v1720 = vunpack.c.l.b16 %v1639
      %v1721 = vunpack.c.l.b16 %v1640
      %v1722 = vunpack.c.l.b16 %v1641
      %v1723 = vunpack.c.l.b16 %v1642
      %v1724 = vunpack.c.l.b16 %v1643
      %v1725 = vunpack.c.l.b16 %v1644
      %v1726 = vunpack.c.l.b16 %v1645
      %v1727 = vunpack.c.l.b16 %v1646
      %v1728 = vunpack.c.l.b16 %v1647
      %v1729 = vunpack.c.l.b16 %v1648
      %v1730 = vunpack.c.l.b16 %v1649
      %v1731 = vunpack.c.l.b16 %v1650
      %v1732 = vunpack.c.l.b16 %v1651
      %v1733 = vunpack.c.l.b16 %v1652
      %v1734 = vunpack.c.l.b16 %v1653
      %v1735 = vunpack.c.l.b16 %v1654
      %v1736 = vunpack.c.l.b16 %v1655
      %v1737 = vunpack.c.l.b16 %v1656
      %v1738 = vunpack.c.l.b16 %v1657
      %v1739 = vpack.c.b16 %v1708, %v1707
      %v1740 = vpack.c.b16 %v1710, %v1709
      %v1741 = vpack.c.b16 %v1712, %v1711
      %v1742 = vpack.c.b16 %v1714, %v1713
      %v1743 = vpack.c.b16 %v1716, %v1715
      %v1744 = vpack.c.b16 %v1718, %v1717
      %v1745 = vpack.c.b16 %v1720, %v1719
      %v1746 = vpack.c.b16 %v1722, %v1721
      %v1747 = vpack.c.b16 %v1724, %v1723
      %v1748 = vpack.c.b16 %v1726, %v1725
      %v1749 = vpack.c.b16 %v1728, %v1727
      %v1750 = vpack.c.b16 %v1730, %v1729
      %v1751 = vpack.c.b16 %v1732, %v1731
      %v1752 = vpack.c.b16 %v1734, %v1733
      %v1753 = vpack.c.b16 %v1736, %v1735
      %v1754 = vpack.c.b16 %v1738, %v1737
      %1771 = vmatprep.subr.bf16.mxu0 0
      %1772 = vmatpush1.bf16.msra.mxu0 %v1746
      %1773 = vmatprep.subr.bf16.mxu0 0
      %1774 = vmatpush1.bf16.msra.mxu0 %v1745
      %1775 = vmatprep.subr.bf16.mxu0 0
      %1776 = vmatpush1.bf16.msra.mxu0 %v1744
      %1777 = vmatprep.subr.bf16.mxu0 0
      %1778 = vmatpush1.bf16.msra.mxu0 %v1743
      %1779 = vmatprep.subr.bf16.mxu0 0
      %1780 = vmatpush1.bf16.msra.mxu0 %v1742
      %1781 = vmatprep.subr.bf16.mxu0 0
      %1782 = vmatpush1.bf16.msra.mxu0 %v1741
      %1783 = vmatprep.subr.bf16.mxu0 0
      %1784 = vmatpush1.bf16.msra.mxu0 %v1740
      %1785 = vmatprep.subr.bf16.mxu0 0
      %1786 = vmatpush1.bf16.msra.mxu0 %v1739
      %1787 = vmatprep.subr.bf16.mxu0 0
      %1788 = vmatpush2.bf16.msra.mxu0 %v1754
      %1789 = vmatprep.subr.bf16.mxu0 0
      %1790 = vmatpush2.bf16.msra.mxu0 %v1753
      %1791 = vmatprep.subr.bf16.mxu0 0
      %1792 = vmatpush2.bf16.msra.mxu0 %v1752
      %1793 = vmatprep.subr.bf16.mxu0 0
      %1794 = vmatpush2.bf16.msra.mxu0 %v1751
      %1795 = vmatprep.subr.bf16.mxu0 0
      %1796 = vmatpush2.bf16.msra.mxu0 %v1750
      %1797 = vmatprep.subr.bf16.mxu0 0
      %1798 = vmatpush2.bf16.msra.mxu0 %v1749
      %1799 = vmatprep.subr.bf16.mxu0 0
      %1800 = vmatpush2.bf16.msra.mxu0 %v1748
      %1801 = vmatprep.subr.bf16.mxu0 0
      %1802 = vmatpush2.bf16.msra.mxu0 %v1747
      %1803 = vmatprep.mubr.bf16.mxu0 %v1672
      %1804 = vmatmul.mubr.bf16.gmra.mxu0 %v1671
      %v1805 = vpop.f32.mrf.mxu0
      %v1806 = vadd.f32 %v1663, %v1805
      %v1807 = vpop.f32.mrf.mxu0
      %v1808 = vpop.f32.mrf.mxu0
      %v1809 = vadd.f32 %v1663, %v1808
      %v1810 = vpop.f32.mrf.mxu0
      %1811 = vdwg.mxu0
      %v1812 = vmax.f32 %v1806, 0.0
      %v1813 = vmax.f32 %v1809, 0.0
      %1814 = vst [vmem:[#allocation7 + $0x8] sm:$0xff] %v1812
      %1815 = vst [vmem:[#allocation7 + $0x10] sm:$0xff] %v1813
      %v1816 = vld [vmem:[#allocation7 + $0x4] sm:$0xff]
      %v1817 = vld [vmem:[#allocation7 + $0xc] sm:$0xff]
      %v1818 = vpack.c.bf16 %v1817, %v1816
      %v1820 = vunpack.c.l.b16 %v1818
      %v1821 = vunpack.c.h.b16 %v1818
      %v1822 = vpack.c.b16 %v1820, %v1820
      %v1823 = vpack.c.b16 %v1821, %v1821
      %1826 = vst [vmem:[#allocation8] sm:$0xf] %v1822
      %1827 = vst [vmem:[#allocation8 + $0x8] sm:$0xf] %v1823
      %v1828 = vld [vmem:[#allocation7 + $0x8] sm:$0xff]
      %v1829 = vld [vmem:[#allocation7 + $0x10] sm:$0xff]
      %v1830 = vpack.c.bf16 %v1829, %v1828
      %v1832 = vunpack.c.l.b16 %v1830
      %v1833 = vunpack.c.h.b16 %v1830
      %v1834 = vpack.c.b16 %v1832, %v1832
      %v1835 = vpack.c.b16 %v1833, %v1833
      %1838 = vst [vmem:[#allocation8 + $0x4] sm:$0xf] %v1834
      %1839 = vst [vmem:[#allocation8 + $0xc] sm:$0xf] %v1835
      %v1840 = vld [vmem:[#allocation8] sm:$0xff]
      %v1841 = vld [vmem:[#allocation8 + $0x8] sm:$0xff]
      %v1842 = vld [vmem:[%s13] sm:$0xf]
      %v1843 = vld [vmem:[%s13 + $0x4] sm:$0xf]
      %v1844 = vld [vmem:[%s13 + $0x8] sm:$0xf]
      %v1845 = vld [vmem:[%s13 + $0xc] sm:$0xf]
      %v1846 = vld [vmem:[%s13 + $0x10] sm:$0xf]
      %v1847 = vld [vmem:[%s13 + $0x14] sm:$0xf]
      %v1848 = vld [vmem:[%s13 + $0x18] sm:$0xf]
      %v1849 = vld [vmem:[%s13 + $0x1c] sm:$0xf]
      %v1850 = vld [vmem:[%s13 + $0x20] sm:$0xf]
      %v1851 = vld [vmem:[%s13 + $0x24] sm:$0xf]
      %v1852 = vld [vmem:[%s13 + $0x28] sm:$0xf]
      %v1853 = vld [vmem:[%s13 + $0x2c] sm:$0xf]
      %v1854 = vld [vmem:[%s13 + $0x30] sm:$0xf]
      %v1855 = vld [vmem:[%s13 + $0x34] sm:$0xf]
      %v1856 = vld [vmem:[%s13 + $0x38] sm:$0xf]
      %v1857 = vld [vmem:[%s13 + $0x3c] sm:$0xf]
      %v1858 = vld [vmem:[%s13 + $0x40] sm:$0xf]
      %v1859 = vld [vmem:[%s13 + $0x44] sm:$0xf]
      %v1860 = vld [vmem:[%s13 + $0x48] sm:$0xf]
      %v1861 = vld [vmem:[%s13 + $0x4c] sm:$0xf]
      %v1862 = vld [vmem:[%s13 + $0x50] sm:$0xf]
      %v1863 = vld [vmem:[%s13 + $0x54] sm:$0xf]
      %v1864 = vld [vmem:[%s13 + $0x58] sm:$0xf]
      %v1865 = vld [vmem:[%s13 + $0x5c] sm:$0xf]
      %v1866 = vld [vmem:[%s13 + $0x60] sm:$0xf]
      %v1867 = vld [vmem:[%s13 + $0x64] sm:$0xf]
      %v1868 = vld [vmem:[%s13 + $0x68] sm:$0xf]
      %v1869 = vld [vmem:[%s13 + $0x6c] sm:$0xf]
      %v1870 = vld [vmem:[%s13 + $0x70] sm:$0xf]
      %v1871 = vld [vmem:[%s13 + $0x74] sm:$0xf]
      %v1872 = vld [vmem:[%s13 + $0x78] sm:$0xf]
      %v1873 = vld [vmem:[%s13 + $0x7c] sm:$0xf]
      %v1874 = vld [vmem:[%s14] sm:$0x1]
      %v1876 = vlaneseq
      %v1877 = vshrl.u32 %v1876, 7
      %v1878 = vsub.s32 0, %v1877
      %v1879 = vrot.slane %v1874, %v1878
      %v1883 = vunpack.c.l.b16 %v1840
      %v1884 = vunpack.c.h.b16 %v1840
      %v1885 = vunpack.c.l.b16 %v1841
      %v1886 = vunpack.c.h.b16 %v1841
      %v1887 = vpack.c.b16 %v1885, %v1883
      %v1888 = vpack.c.b16 %v1886, %v1884
      %v1923 = vunpack.c.l.b16 %v1842
      %v1924 = vunpack.c.l.b16 %v1843
      %v1925 = vunpack.c.l.b16 %v1844
      %v1926 = vunpack.c.l.b16 %v1845
      %v1927 = vunpack.c.l.b16 %v1846
      %v1928 = vunpack.c.l.b16 %v1847
      %v1929 = vunpack.c.l.b16 %v1848
      %v1930 = vunpack.c.l.b16 %v1849
      %v1931 = vunpack.c.l.b16 %v1850
      %v1932 = vunpack.c.l.b16 %v1851
      %v1933 = vunpack.c.l.b16 %v1852
      %v1934 = vunpack.c.l.b16 %v1853
      %v1935 = vunpack.c.l.b16 %v1854
      %v1936 = vunpack.c.l.b16 %v1855
      %v1937 = vunpack.c.l.b16 %v1856
      %v1938 = vunpack.c.l.b16 %v1857
      %v1939 = vunpack.c.l.b16 %v1858
      %v1940 = vunpack.c.l.b16 %v1859
      %v1941 = vunpack.c.l.b16 %v1860
      %v1942 = vunpack.c.l.b16 %v1861
      %v1943 = vunpack.c.l.b16 %v1862
      %v1944 = vunpack.c.l.b16 %v1863
      %v1945 = vunpack.c.l.b16 %v1864
      %v1946 = vunpack.c.l.b16 %v1865
      %v1947 = vunpack.c.l.b16 %v1866
      %v1948 = vunpack.c.l.b16 %v1867
      %v1949 = vunpack.c.l.b16 %v1868
      %v1950 = vunpack.c.l.b16 %v1869
      %v1951 = vunpack.c.l.b16 %v1870
      %v1952 = vunpack.c.l.b16 %v1871
      %v1953 = vunpack.c.l.b16 %v1872
      %v1954 = vunpack.c.l.b16 %v1873
      %v1955 = vpack.c.b16 %v1924, %v1923
      %v1956 = vpack.c.b16 %v1926, %v1925
      %v1957 = vpack.c.b16 %v1928, %v1927
      %v1958 = vpack.c.b16 %v1930, %v1929
      %v1959 = vpack.c.b16 %v1932, %v1931
      %v1960 = vpack.c.b16 %v1934, %v1933
      %v1961 = vpack.c.b16 %v1936, %v1935
      %v1962 = vpack.c.b16 %v1938, %v1937
      %v1963 = vpack.c.b16 %v1940, %v1939
      %v1964 = vpack.c.b16 %v1942, %v1941
      %v1965 = vpack.c.b16 %v1944, %v1943
      %v1966 = vpack.c.b16 %v1946, %v1945
      %v1967 = vpack.c.b16 %v1948, %v1947
      %v1968 = vpack.c.b16 %v1950, %v1949
      %v1969 = vpack.c.b16 %v1952, %v1951
      %v1970 = vpack.c.b16 %v1954, %v1953
      %1987 = vmatprep.subr.bf16.mxu0 0
      %1988 = vmatpush1.bf16.msra.mxu0 %v1962
      %1989 = vmatprep.subr.bf16.mxu0 0
      %1990 = vmatpush1.bf16.msra.mxu0 %v1961
      %1991 = vmatprep.subr.bf16.mxu0 0
      %1992 = vmatpush1.bf16.msra.mxu0 %v1960
      %1993 = vmatprep.subr.bf16.mxu0 0
      %1994 = vmatpush1.bf16.msra.mxu0 %v1959
      %1995 = vmatprep.subr.bf16.mxu0 0
      %1996 = vmatpush1.bf16.msra.mxu0 %v1958
      %1997 = vmatprep.subr.bf16.mxu0 0
      %1998 = vmatpush1.bf16.msra.mxu0 %v1957
      %1999 = vmatprep.subr.bf16.mxu0 0
      %2000 = vmatpush1.bf16.msra.mxu0 %v1956
      %2001 = vmatprep.subr.bf16.mxu0 0
      %2002 = vmatpush1.bf16.msra.mxu0 %v1955
      %2003 = vmatprep.subr.bf16.mxu0 0
      %2004 = vmatpush2.bf16.msra.mxu0 %v1970
      %2005 = vmatprep.subr.bf16.mxu0 0
      %2006 = vmatpush2.bf16.msra.mxu0 %v1969
      %2007 = vmatprep.subr.bf16.mxu0 0
      %2008 = vmatpush2.bf16.msra.mxu0 %v1968
      %2009 = vmatprep.subr.bf16.mxu0 0
      %2010 = vmatpush2.bf16.msra.mxu0 %v1967
      %2011 = vmatprep.subr.bf16.mxu0 0
      %2012 = vmatpush2.bf16.msra.mxu0 %v1966
      %2013 = vmatprep.subr.bf16.mxu0 0
      %2014 = vmatpush2.bf16.msra.mxu0 %v1965
      %2015 = vmatprep.subr.bf16.mxu0 0
      %2016 = vmatpush2.bf16.msra.mxu0 %v1964
      %2017 = vmatprep.subr.bf16.mxu0 0
      %2018 = vmatpush2.bf16.msra.mxu0 %v1963
      %2019 = vmatprep.mubr.bf16.mxu0 %v1888
      %2020 = vmatmul.mubr.bf16.gmra.mxu0 %v1887
      %v2021 = vpop.f32.mrf.mxu0
      %v2022 = vadd.f32 %v1879, %v2021
      %v2023 = vpop.f32.mrf.mxu0
      %v2024 = vpop.f32.mrf.mxu0
      %v2025 = vadd.f32 %v1879, %v2024
      %v2026 = vpop.f32.mrf.mxu0
      %2027 = vdwg.mxu0
      %v2028 = vmax.f32 %v2022, 0.0
      %v2029 = vmax.f32 %v2025, 0.0
      %v2030 = vld [vmem:[#allocation6 + $0x8] sm:$0xff]
      %v2031 = vld [vmem:[#allocation6 + $0x10] sm:$0xff]
      %v2032 = vpack.c.bf16 %v2031, %v2030
      %v2033 = vld [vmem:[%s15] sm:$0xf]
      %v2034 = vld [vmem:[%s15 + $0x4] sm:$0xf]
      %v2035 = vld [vmem:[%s15 + $0x8] sm:$0xf]
      %v2036 = vld [vmem:[%s15 + $0xc] sm:$0xf]
      %v2037 = vld [vmem:[%s15 + $0x10] sm:$0xf]
      %v2038 = vld [vmem:[%s15 + $0x14] sm:$0xf]
      %v2039 = vld [vmem:[%s15 + $0x18] sm:$0xf]
      %v2040 = vld [vmem:[%s15 + $0x1c] sm:$0xf]
      %v2041 = vld [vmem:[%s15 + $0x20] sm:$0xf]
      %v2042 = vld [vmem:[%s15 + $0x24] sm:$0xf]
      %v2043 = vld [vmem:[%s15 + $0x28] sm:$0xf]
      %v2044 = vld [vmem:[%s15 + $0x2c] sm:$0xf]
      %v2045 = vld [vmem:[%s15 + $0x30] sm:$0xf]
      %v2046 = vld [vmem:[%s15 + $0x34] sm:$0xf]
      %v2047 = vld [vmem:[%s15 + $0x38] sm:$0xf]
      %v2048 = vld [vmem:[%s15 + $0x3c] sm:$0xf]
      %v2049 = vld [vmem:[%s16] sm:$0x1]
      %v2051 = vlaneseq
      %v2052 = vshrl.u32 %v2051, 7
      %v2053 = vsub.s32 0, %v2052
      %v2054 = vrot.slane %v2049, %v2053
      %v2072 = vunpack.c.l.b16 %v2033
      %v2073 = vunpack.c.l.b16 %v2034
      %v2074 = vunpack.c.l.b16 %v2035
      %v2075 = vunpack.c.l.b16 %v2036
      %v2076 = vunpack.c.l.b16 %v2037
      %v2077 = vunpack.c.l.b16 %v2038
      %v2078 = vunpack.c.l.b16 %v2039
      %v2079 = vunpack.c.l.b16 %v2040
      %v2080 = vunpack.c.l.b16 %v2041
      %v2081 = vunpack.c.l.b16 %v2042
      %v2082 = vunpack.c.l.b16 %v2043
      %v2083 = vunpack.c.l.b16 %v2044
      %v2084 = vunpack.c.l.b16 %v2045
      %v2085 = vunpack.c.l.b16 %v2046
      %v2086 = vunpack.c.l.b16 %v2047
      %v2087 = vunpack.c.l.b16 %v2048
      %v2088 = vpack.c.b16 %v2073, %v2072
      %v2089 = vpack.c.b16 %v2075, %v2074
      %v2090 = vpack.c.b16 %v2077, %v2076
      %v2091 = vpack.c.b16 %v2079, %v2078
      %v2092 = vpack.c.b16 %v2081, %v2080
      %v2093 = vpack.c.b16 %v2083, %v2082
      %v2094 = vpack.c.b16 %v2085, %v2084
      %v2095 = vpack.c.b16 %v2087, %v2086
      %2104 = vmatprep.subr.bf16.mxu0 0
      %2105 = vmatpush1.bf16.msra.mxu0 %v2095
      %2106 = vmatprep.subr.bf16.mxu0 0
      %2107 = vmatpush1.bf16.msra.mxu0 %v2094
      %2108 = vmatprep.subr.bf16.mxu0 0
      %2109 = vmatpush1.bf16.msra.mxu0 %v2093
      %2110 = vmatprep.subr.bf16.mxu0 0
      %2111 = vmatpush1.bf16.msra.mxu0 %v2092
      %2112 = vmatprep.subr.bf16.mxu0 0
      %2113 = vmatpush1.bf16.msra.mxu0 %v2091
      %2114 = vmatprep.subr.bf16.mxu0 0
      %2115 = vmatpush1.bf16.msra.mxu0 %v2090
      %2116 = vmatprep.subr.bf16.mxu0 0
      %2117 = vmatpush1.bf16.msra.mxu0 %v2089
      %2118 = vmatprep.subr.bf16.mxu0 0
      %2119 = vmatpush1.bf16.msra.mxu0 %v2088
      %2120 = vmatprep.subr.bf16.mxu0 0
      %2121 = vmatpush2.bf16.msra.mxu0 0
      %2122 = vmatprep.subr.bf16.mxu0 0
      %2123 = vmatpush2.bf16.msra.mxu0 0
      %2124 = vmatprep.subr.bf16.mxu0 0
      %2125 = vmatpush2.bf16.msra.mxu0 0
      %2126 = vmatprep.subr.bf16.mxu0 0
      %2127 = vmatpush2.bf16.msra.mxu0 0
      %2128 = vmatprep.subr.bf16.mxu0 0
      %2129 = vmatpush2.bf16.msra.mxu0 0
      %2130 = vmatprep.subr.bf16.mxu0 0
      %2131 = vmatpush2.bf16.msra.mxu0 0
      %2132 = vmatprep.subr.bf16.mxu0 0
      %2133 = vmatpush2.bf16.msra.mxu0 0
      %2134 = vmatprep.subr.bf16.mxu0 0
      %2135 = vmatpush2.bf16.msra.mxu0 0
      %2136 = vmatprep.mubr.bf16.mxu0 0
      %2137 = vmatmul.mubr.bf16.gmra.mxu0 %v2032
      %v2138 = vpop.f32.mrf.mxu0
      %v2139 = vadd.f32 %v2054, %v2138
      %v2140 = vpop.f32.mrf.mxu0
      %v2141 = vpop.f32.mrf.mxu0
      %v2142 = vadd.f32 %v2054, %v2141
      %v2143 = vpop.f32.mrf.mxu0
      %2144 = vdwg.mxu0
      %v2145 = vadd.f32 %v2028, %v2139
      %v2146 = vadd.f32 %v2029, %v2142
      %v2147 = vmax.f32 %v2145, 0.0
      %v2148 = vmax.f32 %v2146, 0.0
      %v2149 = vld [vmem:[#allocation6 + $0x14] sm:$0xf]
      %2150 = vst [vmem:[#allocation6 + $0x4] sm:$0xf] %v2149
      %v2151 = vld [vmem:[#allocation7 + $0x14] sm:$0xf]
      %2152 = vst [vmem:[#allocation7 + $0x4] sm:$0xf] %v2151
      %2153 = vst [vmem:[%s586] sm:$0xff] %v2147
      %2154 = vst [vmem:[%s586 + $0x8] sm:$0xff] %v2148
      %s2155 = smul.u32 2, %s33
      %p2156 = scmp.lt.s32.totalorder %s32, 1
      %s2157 = scalar_select %p2156, %s32, 1
      %p2158 = scmp.lt.s32.totalorder %s2155, 5
      %s2159 = scalar_select %p2158, %s2155, 5
      %s2160 = smul.addr %s2157, 6
      %s2161 = sadd.s32 %s2159, %s2160
      %s2162 = smul.addr %s2161, 8
      %s2163 = scalar_lea.vmem %s17, %s2162
      // Predicated region
      $region93: #{temporal_conv_net.1} parent=87 // pred_check
        %p2164 = pneg %p424
      $region94: #{temporal_conv_net.1} parent=87 // pred_check_branch
        %2166 = sbr.rel (%p2164) target = $region96
      $region95: #{temporal_conv_net.1} parent=87 // pred_region
        %s2167 = smul.u32 2, %s33
      $region96: #{temporal_conv_net.1} parent=87 // pred_fallthru
        _
    $region88: #{temporal_conv_net.1} parent=5 // pred_fallthru
      _
    %p2168 = scmp.le.s32.totalorder 2, %s23
    // Predicated region
    $region97: #{temporal_conv_net.1} parent=5 // pred_check
      %p2169 = pneg %p2168
    $region98: #{temporal_conv_net.1} parent=5 // pred_check_branch
      %2171 = sbr.rel (%p2169) target = $region100
    $region99: #{temporal_conv_net.1} parent=5 // pred_region
      %s2172 = ssub.s32 %s23, 2
      // Predicated region
      $region101: #{temporal_conv_net.1} parent=99 // pred_check
        %p2173 = pneg %p430
      $region102: #{temporal_conv_net.1} parent=99 // pred_check_branch
        %2175 = sbr.rel (%p2173) target = $region104
      $region103: #{temporal_conv_net.1} parent=99 // pred_region
        %s2176 = smul.u32 2, %s35
        %p2177 = scmp.lt.s32.totalorder %s34, 1
        %s2178 = scalar_select %p2177, %s34, 1
        %p2179 = scmp.lt.s32.totalorder %s2176, 5
        %s2180 = scalar_select %p2179, %s2176, 5
        %s2181 = smul.addr %s2178, 6
        %s2182 = sadd.s32 %s2180, %s2181
        %s2183 = smul.addr %s2182, 8
        %s2184 = scalar_lea.vmem %s17, %s2183
      $region104: #{temporal_conv_net.1} parent=99 // pred_fallthru
        _
    $region100: #{temporal_conv_net.1} parent=5 // pred_fallthru
      _
  $region6: #{temporal_conv_net.1} parent=0 // loop_footer
    %s27 = sadd.s32 1, %s23
  $region7: #{temporal_conv_net.1} parent=0 // loop_footer_branch
    %22 = sbr.rel target = $region3
  $region8: #{temporal_conv_net.1} parent=0 // loop_exit
    _

</llo_original>
